<compile_context>
chip_gen: v6e
topology: v6e:2x2x1
jax: 0.10.0
libtpu: 0.0.40
codegen_flags: <defaults>
</compile_context>

<pallas_src>
import numpy as np
import jax
import jax.numpy as jnp
from jax import lax
from jax.experimental import pallas as pl
from jax.experimental.pallas import tpu as pltpu


def _round_up(x, m):
    return ((x + m - 1) // m) * m


# ----------------------------------------------------------------------------
# Pallas kernel: entire autoregressive rollout in one call
# ----------------------------------------------------------------------------
def _recurrent_kernel(
    mask_ref,              # SMEM (steps,) int32: 1 -> use ground-truth input
    x_ref,                 # VMEM (steps, Bp, Dp) ground-truth inputs (padded)
    w11_ref, b11_ref,      # (Dp, Hp), (1, Hp)   block-diag fc1_1 (padded)
    w12_ref, b12_ref,      # (Hp, Hp), (1, Hp)   block-diag fc1_2 (padded)
    wih_ref, whh_ref,      # (L, Hp, 4*Hp)       fused-gate LSTM weights (i,f,g,o)
    bg_ref,                # (L, 1, 4*Hp)        pre-summed b_ih + b_hh
    w21_ref, b21_ref,      # (Hp, Hp), (1, Hp)
    w22_ref, b22_ref,      # (Hp, Dp), (1, Dp)
    out_ref,               # VMEM (steps, Bp, Dp)
):
    steps, Bp, Dp = out_ref.shape
    n_layers, Hp, _ = wih_ref.shape

    # hoist bias broadcasts out of the time loop (JAX does not CSE broadcasts)
    b11 = jnp.broadcast_to(b11_ref[...], (Bp, Hp))
    b12 = jnp.broadcast_to(b12_ref[...], (Bp, Hp))
    b21 = jnp.broadcast_to(b21_ref[...], (Bp, Hp))
    b22 = jnp.broadcast_to(b22_ref[...], (Bp, Dp))
    bg = [jnp.broadcast_to(bg_ref[l], (Bp, 4 * Hp)) for l in range(n_layers)]

    def step_fn(t, carry):
        h, c, prev = carry                      # tuples of (Bp,Hp); (Bp,Dp)
        use_gt = mask_ref[t] == 1
        ins = jnp.where(use_gt, x_ref[t], prev)

        # fc1_1 / fc1_2 (per-atom shared Linear, realized block-diagonally in
        # the atom-blocked lane layout) + ReLU
        # TODO(synk): at large n_atoms the block-diag wastes ~N x MXU FLOPs vs a
        # (B*N, n_in) shared-weight matmul; kept to avoid in-kernel relayouts.
        x = jnp.maximum(
            jnp.dot(ins, w11_ref[...], preferred_element_type=jnp.float32)
            + b11, 0.0)
        x = jnp.maximum(
            jnp.dot(x, w12_ref[...], preferred_element_type=jnp.float32)
            + b12, 0.0)
        # TODO(synk): F.dropout skipped (inference semantics / do_prob = 0.0)

        # stacked LSTM cell, fused gates: 2 wide matmuls per layer
        new_h, new_c = [], []
        for l in range(n_layers):
            z = (jnp.dot(x, wih_ref[l], preferred_element_type=jnp.float32)
                 + jnp.dot(h[l], whh_ref[l], preferred_element_type=jnp.float32)
                 + bg[l])                                     # (Bp, 4*Hp)
            i_g = jax.nn.sigmoid(z[:, 0 * Hp:1 * Hp])
            f_g = jax.nn.sigmoid(z[:, 1 * Hp:2 * Hp])
            g_g = jnp.tanh(z[:, 2 * Hp:3 * Hp])
            o_g = jax.nn.sigmoid(z[:, 3 * Hp:4 * Hp])
            cn = f_g * c[l] + i_g * g_g
            hn = o_g * jnp.tanh(cn)
            new_h.append(hn)
            new_c.append(cn)
            x = hn                                            # (Bp, Hp)

        # fc2_1 + ReLU, fc2_2, residual
        y = jnp.maximum(
            jnp.dot(x, w21_ref[...], preferred_element_type=jnp.float32)
            + b21, 0.0)
        y = (jnp.dot(y, w22_ref[...], preferred_element_type=jnp.float32)
             + b22)
        y = y + ins                                           # n_out == n_in

        out_ref[t] = y
        return (tuple(new_h), tuple(new_c), y)

    h0 = tuple(jnp.zeros((Bp, Hp), jnp.float32) for _ in range(n_layers))
    c0 = tuple(jnp.zeros((Bp, Hp), jnp.float32) for _ in range(n_layers))
    p0 = jnp.zeros((Bp, Dp), jnp.float32)
    lax.fori_loop(0, steps, step_fn, (h0, c0, p0))


# ----------------------------------------------------------------------------
# Glue: parameter prep (padding / gate fusion) + pallas_call wrapper
# ----------------------------------------------------------------------------
def _block_diag(w, n):
    """(din, dout) -> (n*din, n*dout) block-diagonal (per-atom shared Linear)."""
    din, dout = w.shape
    eye = jnp.eye(n, dtype=w.dtype)
    return (eye[:, None, :, None] * w[None, :, None, :]).reshape(n * din, n * dout)


def _pad2(a, rows, cols):
    return jnp.pad(a, ((0, rows - a.shape[0]), (0, cols - a.shape[1])))


def recurrent_baseline_forward(inputs, params, prediction_steps,
                               burn_in=False, burn_in_steps=1):
    """inputs: (B, n_atoms, T, n_in) float32 (same layout as the PyTorch module)."""
    B, N, T, n_in = inputs.shape
    n_hid = params["w1_1"].shape[1]
    n_layers = params["w_ih"].shape[0]
    H = N * n_hid
    n_out = params["w2_2"].shape[1] // N
    assert n_in == n_out, "residual add requires n_in == n_out"
    steps = T - 1
    D = N * n_in

    # lane/sublane-dense padded sizes (padding lanes provably stay zero through
    # the recurrence: zero weight rows/cols + zero bias pad + c0 = h0 = 0)
    Bp = _round_up(B, 8)
    Dp = _round_up(D, 128)
    Hp = _round_up(H, 128)

    # per-step "use ground truth" mask, mirroring the Python control flow
    mask = []
    for step in range(steps):
        if burn_in:
            mask.append(1 if step <= burn_in_steps else 0)
        else:
            mask.append(1 if (step % prediction_steps) == 0 else 0)
    mask = jnp.asarray(mask, dtype=jnp.int32)

    # time-major, atom-flattened, zero-padded ground-truth inputs
    x_tm = jnp.transpose(inputs, (2, 0, 1, 3)).reshape(T, B, D)[:steps]
    x_tm = jnp.pad(x_tm, ((0, 0), (0, Bp - B), (0, Dp - D)))

    # fc1 per-atom Linear as padded block-diagonal weights
    w11 = _pad2(_block_diag(params["w1_1"], N), Dp, Hp)
    b11 = jnp.pad(jnp.tile(params["b1_1"], N), (0, Hp - H)).reshape(1, Hp)
    w12 = _pad2(_block_diag(params["w1_2"], N), Hp, Hp)
    b12 = jnp.pad(jnp.tile(params["b1_2"], N), (0, Hp - H)).reshape(1, Hp)

    # LSTM: fuse the 4 gates (i, f, g, o) into one wide weight per operand
    def fuse(w):   # (L, 4, H, H) -> (L, Hp, 4*Hp), gate g at cols [g*Hp:(g+1)*Hp]
        wp = jnp.pad(w, ((0, 0), (0, 0), (0, Hp - H), (0, Hp - H)))
        return jnp.concatenate([wp[:, g] for g in range(4)], axis=-1)

    wih = fuse(params["w_ih"])
    whh = fuse(params["w_hh"])
    bsum = jnp.pad(params["b_ih"] + params["b_hh"],
                   ((0, 0), (0, 0), (0, Hp - H)))              # (L, 4, Hp)
    bg = bsum.reshape(n_layers, 1, 4 * Hp)

    w21 = _pad2(params["w2_1"], Hp, Hp)
    b21 = jnp.pad(params["b2_1"], (0, Hp - H)).reshape(1, Hp)
    w22 = _pad2(params["w2_2"], Hp, Dp)
    b22 = jnp.pad(params["b2_2"], (0, Dp - D)).reshape(1, Dp)

    param_list = [w11, b11, w12, b12, wih, whh, bg, w21, b21, w22, b22]

    def full_spec(arr):
        nd = arr.ndim
        return pl.BlockSpec(arr.shape, lambda *_, _n=nd: (0,) * _n)

    # TODO(synk): at realistic NRI sizes on v7x, cast the weights to bf16 and/or
    # stream wih/whh from HBM per layer; kept f32-resident here (tiny shapes).
    grid_spec = pltpu.PrefetchScalarGridSpec(
        num_scalar_prefetch=1,
        grid=(1,),                         # single invocation; time loop in-kernel
        in_specs=[full_spec(x_tm)] + [full_spec(p) for p in param_list],
        out_specs=pl.BlockSpec((steps, Bp, Dp), lambda i, m: (0, 0, 0)),
    )

    out = pl.pallas_call(
        _recurrent_kernel,
        out_shape=jax.ShapeDtypeStruct((steps, Bp, Dp), jnp.float32),
        grid_spec=grid_spec,
        compiler_params=pltpu.CompilerParams(
            dimension_semantics=("arbitrary",)),
    )(mask, x_tm, *param_list)

    out = out[:, :B, :D].reshape(steps, B, N, n_out)
    return jnp.transpose(out, (1, 2, 0, 3))        # (B, N, T-1, n_out)


# ----------------------------------------------------------------------------
# Deterministic parameter initialization (matches module __init__ shapes)
# ----------------------------------------------------------------------------
def init_params(key, n_in, n_hid, n_out, n_atoms, n_layers):
    H = n_atoms * n_hid
    keys = jax.random.split(key, 8)

    def xavier(k, fan_in, fan_out):
        std = (2.0 / (fan_in + fan_out)) ** 0.5
        return std * jax.random.normal(k, (fan_in, fan_out), jnp.float32)

    def unif(k, shape, bound):
        return jax.random.uniform(k, shape, jnp.float32, -bound, bound)

    lstm_b = 1.0 / (H ** 0.5)
    return {
        # nn.Linear weights stored transposed as (in, out); biases filled 0.1
        "w1_1": xavier(keys[0], n_in, n_hid),
        "b1_1": jnp.full((n_hid,), 0.1, jnp.float32),
        "w1_2": xavier(keys[1], n_hid, n_hid),
        "b1_2": jnp.full((n_hid,), 0.1, jnp.float32),
        # LSTM (PyTorch default uniform init), gate order (i, f, g, o),
        # stored per-gate transposed: (L, 4, in=H, out=H)
        "w_ih": unif(keys[2], (n_layers, 4, H, H), lstm_b),
        "w_hh": unif(keys[3], (n_layers, 4, H, H), lstm_b),
        "b_ih": unif(keys[4], (n_layers, 4, H), lstm_b),
        "b_hh": unif(keys[5], (n_layers, 4, H), lstm_b),
        "w2_1": xavier(keys[6], H, H),
        "b2_1": jnp.full((H,), 0.1, jnp.float32),
        "w2_2": xavier(keys[7], H, n_atoms * n_out),
        "b2_2": jnp.full((n_atoms * n_out,), 0.1, jnp.float32),
    }


# ----------------------------------------------------------------------------
# Pure-JAX reference (direct transcription of the PyTorch forward)
# ----------------------------------------------------------------------------
def reference_forward(inputs, params, prediction_steps):
    B, N, T, n_in = inputs.shape
    n_hid = params["w1_1"].shape[1]
    n_layers = params["w_ih"].shape[0]
    H = N * n_hid
    n_out = params["w2_2"].shape[1] // N
    h = jnp.zeros((n_layers, B, H), jnp.float32)
    c = jnp.zeros((n_layers, B, H), jnp.float32)
    prev, outs = None, []
    for step in range(T - 1):
        ins = inputs[:, :, step, :] if step % prediction_steps == 0 else prev
        x = jax.nn.relu(jnp.einsum("bnd,dh->bnh", ins, params["w1_1"]) + params["b1_1"])
        x = jax.nn.relu(jnp.einsum("bnd,dh->bnh", x, params["w1_2"]) + params["b1_2"])
        x = x.reshape(B, H)
        new_h, new_c = [], []
        for l in range(n_layers):
            def gate(idx):
                return (x @ params["w_ih"][l, idx] + params["b_ih"][l, idx]
                        + h[l] @ params["w_hh"][l, idx] + params["b_hh"][l, idx])
            i_g, f_g = jax.nn.sigmoid(gate(0)), jax.nn.sigmoid(gate(1))
            g_g, o_g = jnp.tanh(gate(2)), jax.nn.sigmoid(gate(3))
            cn = f_g * c[l] + i_g * g_g
            hn = o_g * jnp.tanh(cn)
            new_h.append(hn); new_c.append(cn)
            x = hn
        h, c = jnp.stack(new_h), jnp.stack(new_c)
        x = jax.nn.relu(x @ params["w2_1"] + params["b2_1"])
        x = x @ params["w2_2"] + params["b2_2"]
        x = x.reshape(B, N, n_out) + ins
        outs.append(x)
        prev = x
    return jnp.stack(outs, axis=2)


if __name__ == "__main__":
    # small shapes consistent with the module: inputs (B, n_atoms, T, n_in)
    B, n_atoms, T = 2, 3, 8
    n_in, n_hid, n_out, n_layers = 4, 16, 4, 2
    prediction_steps = 4

    key = jax.random.PRNGKey(0)
    k_in, k_par = jax.random.split(key)
    inputs = jax.random.normal(k_in, (B, n_atoms, T, n_in), jnp.float32)
    params = init_params(k_par, n_in, n_hid, n_out, n_atoms, n_layers)

    out = recurrent_baseline_forward(inputs, params, prediction_steps)
    out = jax.block_until_ready(out)
    assert out.shape == (B, n_atoms, T - 1, n_out)

    ref = reference_forward(inputs, params, prediction_steps)
    np.testing.assert_allclose(np.asarray(out), np.asarray(ref),
                               rtol=2e-3, atol=2e-3)
    print("KERNEL_OK")
</pallas_src>

<mosaic_0001>
module attributes {stable_mosaic.version = 11 : i64} {
  func.func @_recurrent_kernel(%arg0: i32, %arg1: memref<7xi32, #tpu.memory_space<smem>>, %arg2: memref<7x8x128xf32, #tpu.memory_space<vmem>>, %arg3: memref<128x128xf32, #tpu.memory_space<vmem>>, %arg4: memref<1x128xf32, #tpu.memory_space<vmem>>, %arg5: memref<128x128xf32, #tpu.memory_space<vmem>>, %arg6: memref<1x128xf32, #tpu.memory_space<vmem>>, %arg7: memref<2x128x512xf32, #tpu.memory_space<vmem>>, %arg8: memref<2x128x512xf32, #tpu.memory_space<vmem>>, %arg9: memref<2x1x512xf32, #tpu.memory_space<vmem>>, %arg10: memref<128x128xf32, #tpu.memory_space<vmem>>, %arg11: memref<1x128xf32, #tpu.memory_space<vmem>>, %arg12: memref<128x128xf32, #tpu.memory_space<vmem>>, %arg13: memref<1x128xf32, #tpu.memory_space<vmem>>, %arg14: memref<7x8x128xf32, #tpu.memory_space<vmem>>) attributes {dimension_semantics = [#tpu.dimension_semantics<arbitrary>], iteration_bounds = array<i64: 1>, scalar_prefetch = 1 : i64, scratch_operands = 0 : i64, tpu.core_type = #tpu.core_type<tc>, window_params = [{pipeline_mode = #tpu.pipeline_mode<synchronous>, transform_indices = @transform_0, window_bounds = array<i64: 7, 8, 128>}, {pipeline_mode = #tpu.pipeline_mode<synchronous>, transform_indices = @transform_1, window_bounds = array<i64: 128, 128>}, {pipeline_mode = #tpu.pipeline_mode<synchronous>, transform_indices = @transform_2, window_bounds = array<i64: 1, 128>}, {pipeline_mode = #tpu.pipeline_mode<synchronous>, transform_indices = @transform_3, window_bounds = array<i64: 128, 128>}, {pipeline_mode = #tpu.pipeline_mode<synchronous>, transform_indices = @transform_4, window_bounds = array<i64: 1, 128>}, {pipeline_mode = #tpu.pipeline_mode<synchronous>, transform_indices = @transform_5, window_bounds = array<i64: 2, 128, 512>}, {pipeline_mode = #tpu.pipeline_mode<synchronous>, transform_indices = @transform_6, window_bounds = array<i64: 2, 128, 512>}, {pipeline_mode = #tpu.pipeline_mode<synchronous>, transform_indices = @transform_7, window_bounds = array<i64: 2, 1, 512>}, {pipeline_mode = #tpu.pipeline_mode<synchronous>, transform_indices = @transform_8, window_bounds = array<i64: 128, 128>}, {pipeline_mode = #tpu.pipeline_mode<synchronous>, transform_indices = @transform_9, window_bounds = array<i64: 1, 128>}, {pipeline_mode = #tpu.pipeline_mode<synchronous>, transform_indices = @transform_10, window_bounds = array<i64: 128, 128>}, {pipeline_mode = #tpu.pipeline_mode<synchronous>, transform_indices = @transform_11, window_bounds = array<i64: 1, 128>}, {pipeline_mode = #tpu.pipeline_mode<synchronous>, transform_indices = @transform_12, window_bounds = array<i64: 7, 8, 128>}]} {
    %c0 = arith.constant 0 : index
    %c0_0 = arith.constant 0 : index
    %0 = vector.load %arg4[%c0, %c0_0] : memref<1x128xf32, #tpu.memory_space<vmem>>, vector<1x128xf32>
    %1 = vector.shape_cast %0 : vector<1x128xf32> to vector<1x128xf32>
    %2 = vector.broadcast %1 : vector<1x128xf32> to vector<8x128xf32>
    %c0_1 = arith.constant 0 : index
    %c0_2 = arith.constant 0 : index
    %3 = vector.load %arg6[%c0_1, %c0_2] : memref<1x128xf32, #tpu.memory_space<vmem>>, vector<1x128xf32>
    %4 = vector.shape_cast %3 : vector<1x128xf32> to vector<1x128xf32>
    %5 = vector.broadcast %4 : vector<1x128xf32> to vector<8x128xf32>
    %c0_3 = arith.constant 0 : index
    %c0_4 = arith.constant 0 : index
    %6 = vector.load %arg11[%c0_3, %c0_4] : memref<1x128xf32, #tpu.memory_space<vmem>>, vector<1x128xf32>
    %7 = vector.shape_cast %6 : vector<1x128xf32> to vector<1x128xf32>
    %8 = vector.broadcast %7 : vector<1x128xf32> to vector<8x128xf32>
    %c0_5 = arith.constant 0 : index
    %c0_6 = arith.constant 0 : index
    %9 = vector.load %arg13[%c0_5, %c0_6] : memref<1x128xf32, #tpu.memory_space<vmem>>, vector<1x128xf32>
    %10 = vector.shape_cast %9 : vector<1x128xf32> to vector<1x128xf32>
    %11 = vector.broadcast %10 : vector<1x128xf32> to vector<8x128xf32>
    %c0_7 = arith.constant 0 : index
    %c0_8 = arith.constant 0 : index
    %c0_9 = arith.constant 0 : index
    %12 = vector.load %arg9[%c0_7, %c0_8, %c0_9] : memref<2x1x512xf32, #tpu.memory_space<vmem>>, vector<1x1x512xf32>
    %13 = vector.shape_cast %12 : vector<1x1x512xf32> to vector<1x512xf32>
    %14 = vector.shape_cast %13 : vector<1x512xf32> to vector<1x512xf32>
    %15 = vector.broadcast %14 : vector<1x512xf32> to vector<8x512xf32>
    %c1 = arith.constant 1 : index
    %c0_10 = arith.constant 0 : index
    %c0_11 = arith.constant 0 : index
    %16 = vector.load %arg9[%c1, %c0_10, %c0_11] : memref<2x1x512xf32, #tpu.memory_space<vmem>>, vector<1x1x512xf32>
    %17 = vector.shape_cast %16 : vector<1x1x512xf32> to vector<1x512xf32>
    %18 = vector.shape_cast %17 : vector<1x512xf32> to vector<1x512xf32>
    %19 = vector.broadcast %18 : vector<1x512xf32> to vector<8x512xf32>
    %cst = arith.constant 0.000000e+00 : f32
    %20 = vector.broadcast %cst : f32 to vector<8x128xf32>
    %cst_12 = arith.constant 0.000000e+00 : f32
    %21 = vector.broadcast %cst_12 : f32 to vector<8x128xf32>
    %cst_13 = arith.constant 0.000000e+00 : f32
    %22 = vector.broadcast %cst_13 : f32 to vector<8x128xf32>
    %cst_14 = arith.constant 0.000000e+00 : f32
    %23 = vector.broadcast %cst_14 : f32 to vector<8x128xf32>
    %cst_15 = arith.constant 0.000000e+00 : f32
    %24 = vector.broadcast %cst_15 : f32 to vector<8x128xf32>
    %c0_i32 = arith.constant 0 : i32
    %c7_i32 = arith.constant 7 : i32
    %25 = arith.addi %c0_i32, %c7_i32 : i32
    %c1_i32 = arith.constant 1 : i32
    %26:5 = scf.for %arg15 = %c0_i32 to %25 step %c1_i32 iter_args(%arg16 = %20, %arg17 = %21, %arg18 = %22, %arg19 = %23, %arg20 = %24) -> (vector<8x128xf32>, vector<8x128xf32>, vector<8x128xf32>, vector<8x128xf32>, vector<8x128xf32>)  : i32 {
      %27 = arith.index_cast %arg15 : i32 to index
      %28 = memref.load %arg1[%27] : memref<7xi32, #tpu.memory_space<smem>>
      %c1_i32_17 = arith.constant 1 : i32
      %29 = arith.cmpi eq, %28, %c1_i32_17 : i32
      %30 = arith.index_cast %arg15 : i32 to index
      %c0_18 = arith.constant 0 : index
      %c0_19 = arith.constant 0 : index
      %31 = vector.load %arg2[%30, %c0_18, %c0_19] : memref<7x8x128xf32, #tpu.memory_space<vmem>>, vector<1x8x128xf32>
      %32 = vector.shape_cast %31 : vector<1x8x128xf32> to vector<8x128xf32>
      %33 = arith.select %29, %32, %arg20 : vector<8x128xf32>
      %c0_20 = arith.constant 0 : index
      %c0_21 = arith.constant 0 : index
      %34 = vector.load %arg3[%c0_20, %c0_21] : memref<128x128xf32, #tpu.memory_space<vmem>>, vector<128x128xf32>
      %cst_22 = arith.constant dense<0.000000e+00> : vector<8x128xf32>
      %35 = tpu.matmul %33, %34, %cst_22 {dimension_numbers = #tpu.dot_dimension_numbers<[1], [0], [0], [1], [0, 0, 1, 1], [], []>} : vector<8x128xf32>, vector<128x128xf32>, vector<8x128xf32> -> vector<8x128xf32>
      %36 = arith.addf %35, %2 : vector<8x128xf32>
      %cst_23 = arith.constant 0.000000e+00 : f32
      %37 = vector.broadcast %cst_23 : f32 to vector<8x128xf32>
      %38 = arith.maximumf %36, %37 : vector<8x128xf32>
      %c0_24 = arith.constant 0 : index
      %c0_25 = arith.constant 0 : index
      %39 = vector.load %arg5[%c0_24, %c0_25] : memref<128x128xf32, #tpu.memory_space<vmem>>, vector<128x128xf32>
      %cst_26 = arith.constant dense<0.000000e+00> : vector<8x128xf32>
      %40 = tpu.matmul %38, %39, %cst_26 {dimension_numbers = #tpu.dot_dimension_numbers<[1], [0], [0], [1], [0, 0, 1, 1], [], []>} : vector<8x128xf32>, vector<128x128xf32>, vector<8x128xf32> -> vector<8x128xf32>
      %41 = arith.addf %40, %5 : vector<8x128xf32>
      %cst_27 = arith.constant 0.000000e+00 : f32
      %42 = vector.broadcast %cst_27 : f32 to vector<8x128xf32>
      %43 = arith.maximumf %41, %42 : vector<8x128xf32>
      %c0_28 = arith.constant 0 : index
      %c0_29 = arith.constant 0 : index
      %c0_30 = arith.constant 0 : index
      %44 = vector.load %arg7[%c0_28, %c0_29, %c0_30] : memref<2x128x512xf32, #tpu.memory_space<vmem>>, vector<1x128x512xf32>
      %45 = vector.shape_cast %44 : vector<1x128x512xf32> to vector<128x512xf32>
      %cst_31 = arith.constant dense<0.000000e+00> : vector<8x512xf32>
      %46 = tpu.matmul %43, %45, %cst_31 {dimension_numbers = #tpu.dot_dimension_numbers<[1], [0], [0], [1], [0, 0, 1, 1], [], []>} : vector<8x128xf32>, vector<128x512xf32>, vector<8x512xf32> -> vector<8x512xf32>
      %c0_32 = arith.constant 0 : index
      %c0_33 = arith.constant 0 : index
      %c0_34 = arith.constant 0 : index
      %47 = vector.load %arg8[%c0_32, %c0_33, %c0_34] : memref<2x128x512xf32, #tpu.memory_space<vmem>>, vector<1x128x512xf32>
      %48 = vector.shape_cast %47 : vector<1x128x512xf32> to vector<128x512xf32>
      %cst_35 = arith.constant dense<0.000000e+00> : vector<8x512xf32>
      %49 = tpu.matmul %arg16, %48, %cst_35 {dimension_numbers = #tpu.dot_dimension_numbers<[1], [0], [0], [1], [0, 0, 1, 1], [], []>} : vector<8x128xf32>, vector<128x512xf32>, vector<8x512xf32> -> vector<8x512xf32>
      %50 = arith.addf %46, %49 : vector<8x512xf32>
      %51 = arith.addf %50, %15 : vector<8x512xf32>
      %52 = vector.extract_strided_slice %51 {offsets = [0, 0], sizes = [8, 128], strides = [1, 1]} : vector<8x512xf32> to vector<8x128xf32>
      %53 = arith.negf %52 : vector<8x128xf32>
      %54 = math.exp %53 : vector<8x128xf32>
      %cst_36 = arith.constant 1.000000e+00 : f32
      %55 = vector.broadcast %cst_36 : f32 to vector<8x128xf32>
      %56 = arith.addf %55, %54 : vector<8x128xf32>
      %57 = arith.divf %55, %56 : vector<8x128xf32>
      %58 = vector.extract_strided_slice %51 {offsets = [0, 128], sizes = [8, 128], strides = [1, 1]} : vector<8x512xf32> to vector<8x128xf32>
      %59 = arith.negf %58 : vector<8x128xf32>
      %60 = math.exp %59 : vector<8x128xf32>
      %cst_37 = arith.constant 1.000000e+00 : f32
      %61 = vector.broadcast %cst_37 : f32 to vector<8x128xf32>
      %62 = arith.addf %61, %60 : vector<8x128xf32>
      %63 = arith.divf %61, %62 : vector<8x128xf32>
      %64 = vector.extract_strided_slice %51 {offsets = [0, 256], sizes = [8, 128], strides = [1, 1]} : vector<8x512xf32> to vector<8x128xf32>
      %65 = math.tanh %64 : vector<8x128xf32>
      %66 = vector.extract_strided_slice %51 {offsets = [0, 384], sizes = [8, 128], strides = [1, 1]} : vector<8x512xf32> to vector<8x128xf32>
      %67 = arith.negf %66 : vector<8x128xf32>
      %68 = math.exp %67 : vector<8x128xf32>
      %cst_38 = arith.constant 1.000000e+00 : f32
      %69 = vector.broadcast %cst_38 : f32 to vector<8x128xf32>
      %70 = arith.addf %69, %68 : vector<8x128xf32>
      %71 = arith.divf %69, %70 : vector<8x128xf32>
      %72 = arith.mulf %63, %arg18 : vector<8x128xf32>
      %73 = arith.mulf %57, %65 : vector<8x128xf32>
      %74 = arith.addf %72, %73 : vector<8x128xf32>
      %75 = math.tanh %74 : vector<8x128xf32>
      %76 = arith.mulf %71, %75 : vector<8x128xf32>
      %c1_39 = arith.constant 1 : index
      %c0_40 = arith.constant 0 : index
      %c0_41 = arith.constant 0 : index
      %77 = vector.load %arg7[%c1_39, %c0_40, %c0_41] : memref<2x128x512xf32, #tpu.memory_space<vmem>>, vector<1x128x512xf32>
      %78 = vector.shape_cast %77 : vector<1x128x512xf32> to vector<128x512xf32>
      %cst_42 = arith.constant dense<0.000000e+00> : vector<8x512xf32>
      %79 = tpu.matmul %76, %78, %cst_42 {dimension_numbers = #tpu.dot_dimension_numbers<[1], [0], [0], [1], [0, 0, 1, 1], [], []>} : vector<8x128xf32>, vector<128x512xf32>, vector<8x512xf32> -> vector<8x512xf32>
      %c1_43 = arith.constant 1 : index
      %c0_44 = arith.constant 0 : index
      %c0_45 = arith.constant 0 : index
      %80 = vector.load %arg8[%c1_43, %c0_44, %c0_45] : memref<2x128x512xf32, #tpu.memory_space<vmem>>, vector<1x128x512xf32>
      %81 = vector.shape_cast %80 : vector<1x128x512xf32> to vector<128x512xf32>
      %cst_46 = arith.constant dense<0.000000e+00> : vector<8x512xf32>
      %82 = tpu.matmul %arg17, %81, %cst_46 {dimension_numbers = #tpu.dot_dimension_numbers<[1], [0], [0], [1], [0, 0, 1, 1], [], []>} : vector<8x128xf32>, vector<128x512xf32>, vector<8x512xf32> -> vector<8x512xf32>
      %83 = arith.addf %79, %82 : vector<8x512xf32>
      %84 = arith.addf %83, %19 : vector<8x512xf32>
      %85 = vector.extract_strided_slice %84 {offsets = [0, 0], sizes = [8, 128], strides = [1, 1]} : vector<8x512xf32> to vector<8x128xf32>
      %86 = arith.negf %85 : vector<8x128xf32>
      %87 = math.exp %86 : vector<8x128xf32>
      %cst_47 = arith.constant 1.000000e+00 : f32
      %88 = vector.broadcast %cst_47 : f32 to vector<8x128xf32>
      %89 = arith.addf %88, %87 : vector<8x128xf32>
      %90 = arith.divf %88, %89 : vector<8x128xf32>
      %91 = vector.extract_strided_slice %84 {offsets = [0, 128], sizes = [8, 128], strides = [1, 1]} : vector<8x512xf32> to vector<8x128xf32>
      %92 = arith.negf %91 : vector<8x128xf32>
      %93 = math.exp %92 : vector<8x128xf32>
      %cst_48 = arith.constant 1.000000e+00 : f32
      %94 = vector.broadcast %cst_48 : f32 to vector<8x128xf32>
      %95 = arith.addf %94, %93 : vector<8x128xf32>
      %96 = arith.divf %94, %95 : vector<8x128xf32>
      %97 = vector.extract_strided_slice %84 {offsets = [0, 256], sizes = [8, 128], strides = [1, 1]} : vector<8x512xf32> to vector<8x128xf32>
      %98 = math.tanh %97 : vector<8x128xf32>
      %99 = vector.extract_strided_slice %84 {offsets = [0, 384], sizes = [8, 128], strides = [1, 1]} : vector<8x512xf32> to vector<8x128xf32>
      %100 = arith.negf %99 : vector<8x128xf32>
      %101 = math.exp %100 : vector<8x128xf32>
      %cst_49 = arith.constant 1.000000e+00 : f32
      %102 = vector.broadcast %cst_49 : f32 to vector<8x128xf32>
      %103 = arith.addf %102, %101 : vector<8x128xf32>
      %104 = arith.divf %102, %103 : vector<8x128xf32>
      %105 = arith.mulf %96, %arg19 : vector<8x128xf32>
      %106 = arith.mulf %90, %98 : vector<8x128xf32>
      %107 = arith.addf %105, %106 : vector<8x128xf32>
      %108 = math.tanh %107 : vector<8x128xf32>
      %109 = arith.mulf %104, %108 : vector<8x128xf32>
      %c0_50 = arith.constant 0 : index
      %c0_51 = arith.constant 0 : index
      %110 = vector.load %arg10[%c0_50, %c0_51] : memref<128x128xf32, #tpu.memory_space<vmem>>, vector<128x128xf32>
      %cst_52 = arith.constant dense<0.000000e+00> : vector<8x128xf32>
      %111 = tpu.matmul %109, %110, %cst_52 {dimension_numbers = #tpu.dot_dimension_numbers<[1], [0], [0], [1], [0, 0, 1, 1], [], []>} : vector<8x128xf32>, vector<128x128xf32>, vector<8x128xf32> -> vector<8x128xf32>
      %112 = arith.addf %111, %8 : vector<8x128xf32>
      %cst_53 = arith.constant 0.000000e+00 : f32
      %113 = vector.broadcast %cst_53 : f32 to vector<8x128xf32>
      %114 = arith.maximumf %112, %113 : vector<8x128xf32>
      %c0_54 = arith.constant 0 : index
      %c0_55 = arith.constant 0 : index
      %115 = vector.load %arg12[%c0_54, %c0_55] : memref<128x128xf32, #tpu.memory_space<vmem>>, vector<128x128xf32>
      %cst_56 = arith.constant dense<0.000000e+00> : vector<8x128xf32>
      %116 = tpu.matmul %114, %115, %cst_56 {dimension_numbers = #tpu.dot_dimension_numbers<[1], [0], [0], [1], [0, 0, 1, 1], [], []>} : vector<8x128xf32>, vector<128x128xf32>, vector<8x128xf32> -> vector<8x128xf32>
      %117 = arith.addf %116, %11 : vector<8x128xf32>
      %118 = arith.addf %117, %33 : vector<8x128xf32>
      %119 = arith.index_cast %arg15 : i32 to index
      %c0_57 = arith.constant 0 : index
      %c0_58 = arith.constant 0 : index
      %120 = vector.load %arg14[%119, %c0_57, %c0_58] : memref<7x8x128xf32, #tpu.memory_space<vmem>>, vector<1x8x128xf32>
      %121 = vector.shape_cast %120 : vector<1x8x128xf32> to vector<8x128xf32>
      %122 = vector.shape_cast %118 : vector<8x128xf32> to vector<1x8x128xf32>
      tpu.vector_store %arg14[%119, %c0_57, %c0_58], %122 {strides = array<i32>} : memref<7x8x128xf32, #tpu.memory_space<vmem>>, vector<1x8x128xf32>,
      scf.yield %76, %109, %74, %107, %118 : vector<8x128xf32>, vector<8x128xf32>, vector<8x128xf32>, vector<8x128xf32>, vector<8x128xf32>
    }
    %c7_i32_16 = arith.constant 7 : i32
    return
  }
  func.func @transform_0(%arg0: i32, %arg1: memref<7xi32, #tpu.memory_space<smem>>) -> (i32, i32, i32) {
    %c0_i32 = arith.constant 0 : i32
    %c0_i32_0 = arith.constant 0 : i32
    %c0_i32_1 = arith.constant 0 : i32
    %c0_i32_2 = arith.constant 0 : i32
    return %c0_i32, %c0_i32_0, %c0_i32_1 : i32, i32, i32
  }
  func.func @transform_1(%arg0: i32, %arg1: memref<7xi32, #tpu.memory_space<smem>>) -> (i32, i32) {
    %c0_i32 = arith.constant 0 : i32
    %c0_i32_0 = arith.constant 0 : i32
    %c0_i32_1 = arith.constant 0 : i32
    return %c0_i32, %c0_i32_0 : i32, i32
  }
  func.func @transform_2(%arg0: i32, %arg1: memref<7xi32, #tpu.memory_space<smem>>) -> (i32, i32) {
    %c0_i32 = arith.constant 0 : i32
    %c0_i32_0 = arith.constant 0 : i32
    %c0_i32_1 = arith.constant 0 : i32
    return %c0_i32, %c0_i32_0 : i32, i32
  }
  func.func @transform_3(%arg0: i32, %arg1: memref<7xi32, #tpu.memory_space<smem>>) -> (i32, i32) {
    %c0_i32 = arith.constant 0 : i32
    %c0_i32_0 = arith.constant 0 : i32
    %c0_i32_1 = arith.constant 0 : i32
    return %c0_i32, %c0_i32_0 : i32, i32
  }
  func.func @transform_4(%arg0: i32, %arg1: memref<7xi32, #tpu.memory_space<smem>>) -> (i32, i32) {
    %c0_i32 = arith.constant 0 : i32
    %c0_i32_0 = arith.constant 0 : i32
    %c0_i32_1 = arith.constant 0 : i32
    return %c0_i32, %c0_i32_0 : i32, i32
  }
  func.func @transform_5(%arg0: i32, %arg1: memref<7xi32, #tpu.memory_space<smem>>) -> (i32, i32, i32) {
    %c0_i32 = arith.constant 0 : i32
    %c0_i32_0 = arith.constant 0 : i32
    %c0_i32_1 = arith.constant 0 : i32
    %c0_i32_2 = arith.constant 0 : i32
    return %c0_i32, %c0_i32_0, %c0_i32_1 : i32, i32, i32
  }
  func.func @transform_6(%arg0: i32, %arg1: memref<7xi32, #tpu.memory_space<smem>>) -> (i32, i32, i32) {
    %c0_i32 = arith.constant 0 : i32
    %c0_i32_0 = arith.constant 0 : i32
    %c0_i32_1 = arith.constant 0 : i32
    %c0_i32_2 = arith.constant 0 : i32
    return %c0_i32, %c0_i32_0, %c0_i32_1 : i32, i32, i32
  }
  func.func @transform_7(%arg0: i32, %arg1: memref<7xi32, #tpu.memory_space<smem>>) -> (i32, i32, i32) {
    %c0_i32 = arith.constant 0 : i32
    %c0_i32_0 = arith.constant 0 : i32
    %c0_i32_1 = arith.constant 0 : i32
    %c0_i32_2 = arith.constant 0 : i32
    return %c0_i32, %c0_i32_0, %c0_i32_1 : i32, i32, i32
  }
  func.func @transform_8(%arg0: i32, %arg1: memref<7xi32, #tpu.memory_space<smem>>) -> (i32, i32) {
    %c0_i32 = arith.constant 0 : i32
    %c0_i32_0 = arith.constant 0 : i32
    %c0_i32_1 = arith.constant 0 : i32
    return %c0_i32, %c0_i32_0 : i32, i32
  }
  func.func @transform_9(%arg0: i32, %arg1: memref<7xi32, #tpu.memory_space<smem>>) -> (i32, i32) {
    %c0_i32 = arith.constant 0 : i32
    %c0_i32_0 = arith.constant 0 : i32
    %c0_i32_1 = arith.constant 0 : i32
    return %c0_i32, %c0_i32_0 : i32, i32
  }
  func.func @transform_10(%arg0: i32, %arg1: memref<7xi32, #tpu.memory_space<smem>>) -> (i32, i32) {
    %c0_i32 = arith.constant 0 : i32
    %c0_i32_0 = arith.constant 0 : i32
    %c0_i32_1 = arith.constant 0 : i32
    return %c0_i32, %c0_i32_0 : i32, i32
  }
  func.func @transform_11(%arg0: i32, %arg1: memref<7xi32, #tpu.memory_space<smem>>) -> (i32, i32) {
    %c0_i32 = arith.constant 0 : i32
    %c0_i32_0 = arith.constant 0 : i32
    %c0_i32_1 = arith.constant 0 : i32
    return %c0_i32, %c0_i32_0 : i32, i32
  }
  func.func @transform_12(%arg0: i32, %arg1: memref<7xi32, #tpu.memory_space<smem>>) -> (i32, i32, i32) {
    %c0_i32 = arith.constant 0 : i32
    %c0_i32_0 = arith.constant 0 : i32
    %c0_i32_1 = arith.constant 0 : i32
    %c0_i32_2 = arith.constant 0 : i32
    return %c0_i32, %c0_i32_0, %c0_i32_1 : i32, i32, i32
  }
}

</mosaic_0001>

<llo_original>
// kernel: tpu_custom_call.1
$region0: #{tpu_custom_call.1}
  #allocation0 [shape = 'u32[]', space=smem, size = 0x4, offset = 0x4, fixed_abs, tag = 'smem constant byte address 0x4 - core index']
  #allocation1 [shape = 'u32[144,128]{1,0:T(1,128)}', space=vmem, size = 0x12000, scoped, tag = 'internal scratch']
  #allocation2 [shape = 's32[1]{0}', space=sflag, size = 0x4, scoped, tag = 'scoped memory for tpu_custom_call.1']
  #allocation3 [shape = 'u8[512]{0}', space=smem, size = 0x200, scoped, tag = 'prefetched SMEM operand 0']
  %s0 = inlined_call_operand.hbm [shape: s32[7], index: 0, kind: input, shape index: {}]
  %s1 = inlined_call_operand.hbm [shape: f32[7,8,128], index: 1, kind: input, shape index: {}]
  %s2 = inlined_call_operand.hbm [shape: f32[128,128], index: 2, kind: input, shape index: {}]
  %s3 = inlined_call_operand.vmem [shape: f32[1,128], index: 3, kind: input, shape index: {}]
  %s4 = inlined_call_operand.hbm [shape: f32[128,128], index: 4, kind: input, shape index: {}]
  %s5 = inlined_call_operand.vmem [shape: f32[1,128], index: 5, kind: input, shape index: {}]
  %s6 = inlined_call_operand.hbm [shape: f32[2,128,512], index: 6, kind: input, shape index: {}]
  %s7 = inlined_call_operand.hbm [shape: f32[2,128,512], index: 7, kind: input, shape index: {}]
  %s8 = inlined_call_operand.vmem [shape: f32[2,1,512], index: 8, kind: input, shape index: {}]
  %s9 = inlined_call_operand.hbm [shape: f32[128,128], index: 9, kind: input, shape index: {}]
  %s10 = inlined_call_operand.vmem [shape: f32[1,128], index: 10, kind: input, shape index: {}]
  %s11 = inlined_call_operand.hbm [shape: f32[128,128], index: 11, kind: input, shape index: {}]
  %s12 = inlined_call_operand.vmem [shape: f32[1,128], index: 12, kind: input, shape index: {}]
  %s13 = inlined_call_operand.hbm [shape: f32[7,8,128], index: 13, kind: output, shape index: {}]
  %s14 = sld [smem:[#allocation0]]
  $region93: #{tpu_custom_call.1} parent=0
    _
  %s16 = ssub.s32 1, %s14
  %s17 = scalar_select 0, %s16, %s14
  %19 = dma.hbm_to_smem %s0, 16, [#allocation3], [#allocation2]
  %20 = dma.done [#allocation2], 16
  %21 = sfence
  $region1: #{tpu_custom_call.1} parent=0
    #allocation4 [shape = 'u8[28672]{0}', space=vmem, size = 0x7000, scoped, tag = 'input window, operand 1, single buffered']
    #allocation5 [shape = 's32[1]{0}', space=sflag, size = 0x4, scoped, tag = 'scoped memory for tpu_custom_call.1']
    #allocation6 [shape = 's32[1]{0}', space=sflag, size = 0x4, scoped, tag = 'scoped memory for tpu_custom_call.1']
    #allocation7 [shape = 'u8[65536]{0}', space=vmem, size = 0x10000, scoped, tag = 'input window, operand 2, single buffered']
    #allocation8 [shape = 's32[1]{0}', space=sflag, size = 0x4, scoped, tag = 'scoped memory for tpu_custom_call.1']
    #allocation9 [shape = 'u8[65536]{0}', space=vmem, size = 0x10000, scoped, tag = 'input window, operand 4, single buffered']
    #allocation10 [shape = 'u8[524288]{0}', space=vmem, size = 0x80000, scoped, tag = 'input window, operand 6, single buffered']
    #allocation11 [shape = 's32[1]{0}', space=sflag, size = 0x4, scoped, tag = 'scoped memory for tpu_custom_call.1']
    #allocation12 [shape = 'u8[524288]{0}', space=vmem, size = 0x80000, scoped, tag = 'input window, operand 7, single buffered']
    #allocation13 [shape = 'u8[65536]{0}', space=vmem, size = 0x10000, scoped, tag = 'input window, operand 9, single buffered']
    #allocation14 [shape = 's32[1]{0}', space=sflag, size = 0x4, scoped, tag = 'scoped memory for tpu_custom_call.1']
    #allocation15 [shape = 'u8[65536]{0}', space=vmem, size = 0x10000, scoped, tag = 'input window, operand 11, single buffered']
    #allocation16 [shape = 'u8[28672]{0}', space=vmem, size = 0x7000, scoped, tag = 'output window, operand 0, single buffered']
    %22 = vsyncpa [#allocation5], 0
    %23 = vsyncpa [#allocation8], 0
    %24 = vsyncpa [#allocation11], 0
    %25 = vsyncpa [#allocation14], 0
    %26 = vsyncpa [#allocation6], 0
    // Predicated region
    $region2: #{tpu_custom_call.1} parent=1 // pred_check
      _
    $region3: #{tpu_custom_call.1} parent=1 // pred_check_branch
      %28 = sbr.rel (0) target = $region5
    $region4: #{tpu_custom_call.1} parent=1 // pred_region
      %s30 = ssub.s32 896, 896
      %31 = vsyncadd [#allocation5], %s30
      %s32 = sshll.u32 [#allocation4], 4
      %s33 = int_to_ptr.vmem [resolvable:$true] %s32
      %38 = dma.hbm_to_vmem [thread:$0]  %s1, 896, %s33, [#allocation5], 128, 128, 8
    $region5: #{tpu_custom_call.1} parent=1 // pred_fallthru
      _
    // Predicated region
    $region6: #{tpu_custom_call.1} parent=1 // pred_check
      _
    $region7: #{tpu_custom_call.1} parent=1 // pred_check_branch
      %40 = sbr.rel (0) target = $region9
    $region8: #{tpu_custom_call.1} parent=1 // pred_region
      %s42 = ssub.s32 2048, 2048
      %43 = vsyncadd [#allocation8], %s42
      %s44 = sshll.u32 [#allocation7], 4
      %s45 = int_to_ptr.vmem [resolvable:$true] %s44
      %50 = dma.hbm_to_vmem [thread:$0]  %s2, 2048, %s45, [#allocation8], 128, 128, 8
    $region9: #{tpu_custom_call.1} parent=1 // pred_fallthru
      _
    // Predicated region
    $region10: #{tpu_custom_call.1} parent=1 // pred_check
      _
    $region11: #{tpu_custom_call.1} parent=1 // pred_check_branch
      %52 = sbr.rel (0) target = $region13
    $region12: #{tpu_custom_call.1} parent=1 // pred_region
      _
    $region13: #{tpu_custom_call.1} parent=1 // pred_fallthru
      _
    // Predicated region
    $region14: #{tpu_custom_call.1} parent=1 // pred_check
      _
    $region15: #{tpu_custom_call.1} parent=1 // pred_check_branch
      %54 = sbr.rel (0) target = $region17
    $region16: #{tpu_custom_call.1} parent=1 // pred_region
      %s56 = ssub.s32 2048, 2048
      %57 = vsyncadd [#allocation8], %s56
      %s58 = sshll.u32 [#allocation9], 4
      %s59 = int_to_ptr.vmem [resolvable:$true] %s58
      %64 = dma.hbm_to_vmem [thread:$0]  %s4, 2048, %s59, [#allocation8], 128, 128, 8
    $region17: #{tpu_custom_call.1} parent=1 // pred_fallthru
      _
    // Predicated region
    $region18: #{tpu_custom_call.1} parent=1 // pred_check
      _
    $region19: #{tpu_custom_call.1} parent=1 // pred_check_branch
      %66 = sbr.rel (0) target = $region21
    $region20: #{tpu_custom_call.1} parent=1 // pred_region
      _
    $region21: #{tpu_custom_call.1} parent=1 // pred_fallthru
      _
    // Predicated region
    $region22: #{tpu_custom_call.1} parent=1 // pred_check
      _
    $region23: #{tpu_custom_call.1} parent=1 // pred_check_branch
      %68 = sbr.rel (0) target = $region25
    $region24: #{tpu_custom_call.1} parent=1 // pred_region
      %s70 = ssub.s32 16384, 16384
      %71 = vsyncadd [#allocation11], %s70
      %s72 = sshll.u32 [#allocation10], 4
      %s73 = int_to_ptr.vmem [resolvable:$true] %s72
      %78 = dma.hbm_to_vmem [thread:$0]  %s6, 16384, %s73, [#allocation11], 512, 512, 32
    $region25: #{tpu_custom_call.1} parent=1 // pred_fallthru
      _
    // Predicated region
    $region26: #{tpu_custom_call.1} parent=1 // pred_check
      _
    $region27: #{tpu_custom_call.1} parent=1 // pred_check_branch
      %80 = sbr.rel (0) target = $region29
    $region28: #{tpu_custom_call.1} parent=1 // pred_region
      %s82 = ssub.s32 16384, 16384
      %83 = vsyncadd [#allocation11], %s82
      %s84 = sshll.u32 [#allocation12], 4
      %s85 = int_to_ptr.vmem [resolvable:$true] %s84
      %90 = dma.hbm_to_vmem [thread:$0]  %s7, 16384, %s85, [#allocation11], 512, 512, 32
    $region29: #{tpu_custom_call.1} parent=1 // pred_fallthru
      _
    // Predicated region
    $region30: #{tpu_custom_call.1} parent=1 // pred_check
      _
    $region31: #{tpu_custom_call.1} parent=1 // pred_check_branch
      %92 = sbr.rel (0) target = $region33
    $region32: #{tpu_custom_call.1} parent=1 // pred_region
      _
    $region33: #{tpu_custom_call.1} parent=1 // pred_fallthru
      _
    // Predicated region
    $region34: #{tpu_custom_call.1} parent=1 // pred_check
      _
    $region35: #{tpu_custom_call.1} parent=1 // pred_check_branch
      %94 = sbr.rel (0) target = $region37
    $region36: #{tpu_custom_call.1} parent=1 // pred_region
      %s96 = ssub.s32 2048, 2048
      %97 = vsyncadd [#allocation14], %s96
      %s98 = sshll.u32 [#allocation13], 4
      %s99 = int_to_ptr.vmem [resolvable:$true] %s98
      %104 = dma.hbm_to_vmem [thread:$0]  %s9, 2048, %s99, [#allocation14], 128, 128, 8
    $region37: #{tpu_custom_call.1} parent=1 // pred_fallthru
      _
    // Predicated region
    $region38: #{tpu_custom_call.1} parent=1 // pred_check
      _
    $region39: #{tpu_custom_call.1} parent=1 // pred_check_branch
      %106 = sbr.rel (0) target = $region41
    $region40: #{tpu_custom_call.1} parent=1 // pred_region
      _
    $region41: #{tpu_custom_call.1} parent=1 // pred_fallthru
      _
    // Predicated region
    $region42: #{tpu_custom_call.1} parent=1 // pred_check
      _
    $region43: #{tpu_custom_call.1} parent=1 // pred_check_branch
      %108 = sbr.rel (0) target = $region45
    $region44: #{tpu_custom_call.1} parent=1 // pred_region
      %s110 = ssub.s32 2048, 2048
      %111 = vsyncadd [#allocation14], %s110
      %s112 = sshll.u32 [#allocation15], 4
      %s113 = int_to_ptr.vmem [resolvable:$true] %s112
      %118 = dma.hbm_to_vmem [thread:$0]  %s11, 2048, %s113, [#allocation14], 128, 128, 8
    $region45: #{tpu_custom_call.1} parent=1 // pred_fallthru
      _
    // Predicated region
    $region46: #{tpu_custom_call.1} parent=1 // pred_check
      _
    $region47: #{tpu_custom_call.1} parent=1 // pred_check_branch
      %120 = sbr.rel (0) target = $region49
    $region48: #{tpu_custom_call.1} parent=1 // pred_region
      _
    $region49: #{tpu_custom_call.1} parent=1 // pred_fallthru
      _
    // Predicated region
    $region50: #{tpu_custom_call.1} parent=1 // pred_check
      _
    $region51: #{tpu_custom_call.1} parent=1 // pred_check_branch
      %122 = sbr.rel (0) target = $region53
    $region52: #{tpu_custom_call.1} parent=1 // pred_region
      %123 = dma.done [#allocation5], 896
    $region53: #{tpu_custom_call.1} parent=1 // pred_fallthru
      _
    // Predicated region
    $region54: #{tpu_custom_call.1} parent=1 // pred_check
      _
    $region55: #{tpu_custom_call.1} parent=1 // pred_check_branch
      %125 = sbr.rel (0) target = $region57
    $region56: #{tpu_custom_call.1} parent=1 // pred_region
      %126 = dma.done [#allocation8], 2048
    $region57: #{tpu_custom_call.1} parent=1 // pred_fallthru
      _
    // Predicated region
    $region58: #{tpu_custom_call.1} parent=1 // pred_check
      _
    $region59: #{tpu_custom_call.1} parent=1 // pred_check_branch
      %128 = sbr.rel (0) target = $region61
    $region60: #{tpu_custom_call.1} parent=1 // pred_region
      %129 = dma.done [#allocation8], 2048
    $region61: #{tpu_custom_call.1} parent=1 // pred_fallthru
      _
    // Predicated region
    $region62: #{tpu_custom_call.1} parent=1 // pred_check
      _
    $region63: #{tpu_custom_call.1} parent=1 // pred_check_branch
      %131 = sbr.rel (0) target = $region65
    $region64: #{tpu_custom_call.1} parent=1 // pred_region
      %132 = dma.done [#allocation11], 16384
    $region65: #{tpu_custom_call.1} parent=1 // pred_fallthru
      _
    // Predicated region
    $region66: #{tpu_custom_call.1} parent=1 // pred_check
      _
    $region67: #{tpu_custom_call.1} parent=1 // pred_check_branch
      %134 = sbr.rel (0) target = $region69
    $region68: #{tpu_custom_call.1} parent=1 // pred_region
      %135 = dma.done [#allocation11], 16384
    $region69: #{tpu_custom_call.1} parent=1 // pred_fallthru
      _
    // Predicated region
    $region70: #{tpu_custom_call.1} parent=1 // pred_check
      _
    $region71: #{tpu_custom_call.1} parent=1 // pred_check_branch
      %137 = sbr.rel (0) target = $region73
    $region72: #{tpu_custom_call.1} parent=1 // pred_region
      %138 = dma.done [#allocation14], 2048
    $region73: #{tpu_custom_call.1} parent=1 // pred_fallthru
      _
    // Predicated region
    $region74: #{tpu_custom_call.1} parent=1 // pred_check
      _
    $region75: #{tpu_custom_call.1} parent=1 // pred_check_branch
      %140 = sbr.rel (0) target = $region77
    $region76: #{tpu_custom_call.1} parent=1 // pred_region
      %141 = dma.done [#allocation14], 2048
    $region77: #{tpu_custom_call.1} parent=1 // pred_fallthru
      _
    %v142 = vld [vmem:[%s3] sm:$0x1]
    %v144 = vlaneseq
    %v145 = vshrl.u32 %v144, 7
    %v146 = vsub.s32 0, %v145
    %v147 = vrot.slane %v142, %v146
    %v149 = vld [vmem:[%s5] sm:$0x1]
    %v151 = vlaneseq
    %v152 = vshrl.u32 %v151, 7
    %v153 = vsub.s32 0, %v152
    %v154 = vrot.slane %v149, %v153
    %v156 = vld [vmem:[%s10] sm:$0x1]
    %v158 = vlaneseq
    %v159 = vshrl.u32 %v158, 7
    %v160 = vsub.s32 0, %v159
    %v161 = vrot.slane %v156, %v160
    %v163 = vld [vmem:[%s12] sm:$0x1]
    %v165 = vlaneseq
    %v166 = vshrl.u32 %v165, 7
    %v167 = vsub.s32 0, %v166
    %v168 = vrot.slane %v163, %v167
    %v170 = vld [vmem:[%s8] sm:$0xf]
    %v172 = vlaneseq
    %v173 = vshrl.u32 %v172, 7
    %v174 = vsub.s32 0, %v173
    %v175 = vrot.slane %v170, %v174
    %v176 = vlaneseq
    %v177 = vshrl.u32 %v176, 7
    %v178 = vsub.s32 1, %v177
    %v179 = vrot.slane %v170, %v178
    %v180 = vlaneseq
    %v181 = vshrl.u32 %v180, 7
    %v182 = vsub.s32 2, %v181
    %v183 = vrot.slane %v170, %v182
    %v184 = vlaneseq
    %v185 = vshrl.u32 %v184, 7
    %v186 = vsub.s32 3, %v185
    %v187 = vrot.slane %v170, %v186
    %s192 = scalar_lea.vmem %s8, 4
    %v193 = vld [vmem:[%s192] sm:$0xf]
    %v195 = vlaneseq
    %v196 = vshrl.u32 %v195, 7
    %v197 = vsub.s32 0, %v196
    %v198 = vrot.slane %v193, %v197
    %v199 = vlaneseq
    %v200 = vshrl.u32 %v199, 7
    %v201 = vsub.s32 1, %v200
    %v202 = vrot.slane %v193, %v201
    %v203 = vlaneseq
    %v204 = vshrl.u32 %v203, 7
    %v205 = vsub.s32 2, %v204
    %v206 = vrot.slane %v193, %v205
    %v207 = vlaneseq
    %v208 = vshrl.u32 %v207, 7
    %v209 = vsub.s32 3, %v208
    %v210 = vrot.slane %v193, %v209
    loop: start=0, step=1, limit=7
    $region78: #{tpu_custom_call.1} parent=1 // loop_pre_header
      _
    $region79: #{tpu_custom_call.1} parent=1 // loop_header
      %s216 = sphi 0, %s220
      %p217 = scmp.ge.s32.totalorder %s216, 7
      %v221 = vphi 0.0, %v848
      %v222 = vphi 0.0, %v1290
      %v223 = vphi 0.0, %v846
      %v224 = vphi 0.0, %v1288
      %v225 = vphi 0.0, %v1464
    $region80: #{tpu_custom_call.1} parent=1 // loop_header_branch
      %219 = sbr.rel (%p217) target = $region84
    $region81: #{tpu_custom_call.1} parent=1 // loop_body
      %s226 = sld [smem:[#allocation3 + %s216]]
      %p227 = scmp.eq.s32.totalorder %s226, 1
      %s228 = smul.u32 %s216, 8
      %s229 = scalar_lea.vmem [#allocation4], %s228
      %v230 = vld [vmem:[%s229] sm:$0xff]
      %s231 = scalar_select %p227, 1, 0
      %v232 = vstv %s231
      %vm233 = vcmp.eq.s32.totalorder %v232, 1
      %v234 = vsel %vm233, %v230, %v225
      %v235 = vld [vmem:[#allocation7] sm:$0xff]
      %v236 = vld [vmem:[#allocation7 + $0x8] sm:$0xff]
      %v237 = vld [vmem:[#allocation7 + $0x10] sm:$0xff]
      %v238 = vld [vmem:[#allocation7 + $0x18] sm:$0xff]
      %v239 = vld [vmem:[#allocation7 + $0x20] sm:$0xff]
      %v240 = vld [vmem:[#allocation7 + $0x28] sm:$0xff]
      %v241 = vld [vmem:[#allocation7 + $0x30] sm:$0xff]
      %v242 = vld [vmem:[#allocation7 + $0x38] sm:$0xff]
      %v243 = vld [vmem:[#allocation7 + $0x40] sm:$0xff]
      %v244 = vld [vmem:[#allocation7 + $0x48] sm:$0xff]
      %v245 = vld [vmem:[#allocation7 + $0x50] sm:$0xff]
      %v246 = vld [vmem:[#allocation7 + $0x58] sm:$0xff]
      %v247 = vld [vmem:[#allocation7 + $0x60] sm:$0xff]
      %v248 = vld [vmem:[#allocation7 + $0x68] sm:$0xff]
      %v249 = vld [vmem:[#allocation7 + $0x70] sm:$0xff]
      %v250 = vld [vmem:[#allocation7 + $0x78] sm:$0xff]
      %251 = vmatprep.subr.mxu0 0.0
      %252 = vmatpush1.msra.mxu0 %v250
      %253 = vmatprep.subr.mxu0 0.0
      %254 = vmatpush1.msra.mxu0 %v249
      %255 = vmatprep.subr.mxu0 0.0
      %256 = vmatpush1.msra.mxu0 %v248
      %257 = vmatprep.subr.mxu0 0.0
      %258 = vmatpush1.msra.mxu0 %v247
      %259 = vmatprep.subr.mxu0 0.0
      %260 = vmatpush1.msra.mxu0 %v246
      %261 = vmatprep.subr.mxu0 0.0
      %262 = vmatpush1.msra.mxu0 %v245
      %263 = vmatprep.subr.mxu0 0.0
      %264 = vmatpush1.msra.mxu0 %v244
      %265 = vmatprep.subr.mxu0 0.0
      %266 = vmatpush1.msra.mxu0 %v243
      %267 = vmatprep.subr.mxu0 0.0
      %268 = vmatpush1.msra.mxu0 %v242
      %269 = vmatprep.subr.mxu0 0.0
      %270 = vmatpush1.msra.mxu0 %v241
      %271 = vmatprep.subr.mxu0 0.0
      %272 = vmatpush1.msra.mxu0 %v240
      %273 = vmatprep.subr.mxu0 0.0
      %274 = vmatpush1.msra.mxu0 %v239
      %275 = vmatprep.subr.mxu0 0.0
      %276 = vmatpush1.msra.mxu0 %v238
      %277 = vmatprep.subr.mxu0 0.0
      %278 = vmatpush1.msra.mxu0 %v237
      %279 = vmatprep.subr.mxu0 0.0
      %280 = vmatpush1.msra.mxu0 %v236
      %281 = vmatprep.subr.mxu0 0.0
      %282 = vmatpush1.msra.mxu0 %v235
      %283 = vmatprep.subr.mxu0 0.0
      %284 = vmatpush2.msra.mxu0 0.0
      %285 = vmatprep.subr.mxu0 0.0
      %286 = vmatpush2.msra.mxu0 0.0
      %287 = vmatprep.subr.mxu0 0.0
      %288 = vmatpush2.msra.mxu0 0.0
      %289 = vmatprep.subr.mxu0 0.0
      %290 = vmatpush2.msra.mxu0 0.0
      %291 = vmatprep.subr.mxu0 0.0
      %292 = vmatpush2.msra.mxu0 0.0
      %293 = vmatprep.subr.mxu0 0.0
      %294 = vmatpush2.msra.mxu0 0.0
      %295 = vmatprep.subr.mxu0 0.0
      %296 = vmatpush2.msra.mxu0 0.0
      %297 = vmatprep.subr.mxu0 0.0
      %298 = vmatpush2.msra.mxu0 0.0
      %299 = vmatprep.subr.mxu0 0.0
      %300 = vmatpush2.msra.mxu0 0.0
      %301 = vmatprep.subr.mxu0 0.0
      %302 = vmatpush2.msra.mxu0 0.0
      %303 = vmatprep.subr.mxu0 0.0
      %304 = vmatpush2.msra.mxu0 0.0
      %305 = vmatprep.subr.mxu0 0.0
      %306 = vmatpush2.msra.mxu0 0.0
      %307 = vmatprep.subr.mxu0 0.0
      %308 = vmatpush2.msra.mxu0 0.0
      %309 = vmatprep.subr.mxu0 0.0
      %310 = vmatpush2.msra.mxu0 0.0
      %311 = vmatprep.subr.mxu0 0.0
      %312 = vmatpush2.msra.mxu0 0.0
      %313 = vmatprep.subr.mxu0 0.0
      %314 = vmatpush2.msra.mxu0 0.0
      %315 = vmatprep.mubr.f32.mxu0 0.0
      %316 = vmatmul.mubr.f32.gmra.mxu0 %v234
      %v317 = vpop.f32.mrf.mxu0
      %v318 = vadd.f32 %v147, %v317
      %v319 = vpop.f32.mrf.mxu0
      %320 = vdwg.mxu0
      %v321 = vmax.f32 %v318, 0.0
      %v322 = vld [vmem:[#allocation9] sm:$0xff]
      %v323 = vld [vmem:[#allocation9 + $0x8] sm:$0xff]
      %v324 = vld [vmem:[#allocation9 + $0x10] sm:$0xff]
      %v325 = vld [vmem:[#allocation9 + $0x18] sm:$0xff]
      %v326 = vld [vmem:[#allocation9 + $0x20] sm:$0xff]
      %v327 = vld [vmem:[#allocation9 + $0x28] sm:$0xff]
      %v328 = vld [vmem:[#allocation9 + $0x30] sm:$0xff]
      %v329 = vld [vmem:[#allocation9 + $0x38] sm:$0xff]
      %v330 = vld [vmem:[#allocation9 + $0x40] sm:$0xff]
      %v331 = vld [vmem:[#allocation9 + $0x48] sm:$0xff]
      %v332 = vld [vmem:[#allocation9 + $0x50] sm:$0xff]
      %v333 = vld [vmem:[#allocation9 + $0x58] sm:$0xff]
      %v334 = vld [vmem:[#allocation9 + $0x60] sm:$0xff]
      %v335 = vld [vmem:[#allocation9 + $0x68] sm:$0xff]
      %v336 = vld [vmem:[#allocation9 + $0x70] sm:$0xff]
      %v337 = vld [vmem:[#allocation9 + $0x78] sm:$0xff]
      %338 = vmatprep.subr.mxu0 0.0
      %339 = vmatpush1.msra.mxu0 %v337
      %340 = vmatprep.subr.mxu0 0.0
      %341 = vmatpush1.msra.mxu0 %v336
      %342 = vmatprep.subr.mxu0 0.0
      %343 = vmatpush1.msra.mxu0 %v335
      %344 = vmatprep.subr.mxu0 0.0
      %345 = vmatpush1.msra.mxu0 %v334
      %346 = vmatprep.subr.mxu0 0.0
      %347 = vmatpush1.msra.mxu0 %v333
      %348 = vmatprep.subr.mxu0 0.0
      %349 = vmatpush1.msra.mxu0 %v332
      %350 = vmatprep.subr.mxu0 0.0
      %351 = vmatpush1.msra.mxu0 %v331
      %352 = vmatprep.subr.mxu0 0.0
      %353 = vmatpush1.msra.mxu0 %v330
      %354 = vmatprep.subr.mxu0 0.0
      %355 = vmatpush1.msra.mxu0 %v329
      %356 = vmatprep.subr.mxu0 0.0
      %357 = vmatpush1.msra.mxu0 %v328
      %358 = vmatprep.subr.mxu0 0.0
      %359 = vmatpush1.msra.mxu0 %v327
      %360 = vmatprep.subr.mxu0 0.0
      %361 = vmatpush1.msra.mxu0 %v326
      %362 = vmatprep.subr.mxu0 0.0
      %363 = vmatpush1.msra.mxu0 %v325
      %364 = vmatprep.subr.mxu0 0.0
      %365 = vmatpush1.msra.mxu0 %v324
      %366 = vmatprep.subr.mxu0 0.0
      %367 = vmatpush1.msra.mxu0 %v323
      %368 = vmatprep.subr.mxu0 0.0
      %369 = vmatpush1.msra.mxu0 %v322
      %370 = vmatprep.subr.mxu0 0.0
      %371 = vmatpush2.msra.mxu0 0.0
      %372 = vmatprep.subr.mxu0 0.0
      %373 = vmatpush2.msra.mxu0 0.0
      %374 = vmatprep.subr.mxu0 0.0
      %375 = vmatpush2.msra.mxu0 0.0
      %376 = vmatprep.subr.mxu0 0.0
      %377 = vmatpush2.msra.mxu0 0.0
      %378 = vmatprep.subr.mxu0 0.0
      %379 = vmatpush2.msra.mxu0 0.0
      %380 = vmatprep.subr.mxu0 0.0
      %381 = vmatpush2.msra.mxu0 0.0
      %382 = vmatprep.subr.mxu0 0.0
      %383 = vmatpush2.msra.mxu0 0.0
      %384 = vmatprep.subr.mxu0 0.0
      %385 = vmatpush2.msra.mxu0 0.0
      %386 = vmatprep.subr.mxu0 0.0
      %387 = vmatpush2.msra.mxu0 0.0
      %388 = vmatprep.subr.mxu0 0.0
      %389 = vmatpush2.msra.mxu0 0.0
      %390 = vmatprep.subr.mxu0 0.0
      %391 = vmatpush2.msra.mxu0 0.0
      %392 = vmatprep.subr.mxu0 0.0
      %393 = vmatpush2.msra.mxu0 0.0
      %394 = vmatprep.subr.mxu0 0.0
      %395 = vmatpush2.msra.mxu0 0.0
      %396 = vmatprep.subr.mxu0 0.0
      %397 = vmatpush2.msra.mxu0 0.0
      %398 = vmatprep.subr.mxu0 0.0
      %399 = vmatpush2.msra.mxu0 0.0
      %400 = vmatprep.subr.mxu0 0.0
      %401 = vmatpush2.msra.mxu0 0.0
      %402 = vmatprep.mubr.f32.mxu0 0.0
      %403 = vmatmul.mubr.f32.gmra.mxu0 %v321
      %v404 = vpop.f32.mrf.mxu0
      %v405 = vadd.f32 %v154, %v404
      %v406 = vpop.f32.mrf.mxu0
      %407 = vdwg.mxu0
      %v408 = vmax.f32 %v405, 0.0
      %v409 = vld [vmem:[#allocation10] sm:$0xff]
      %v410 = vld [vmem:[#allocation10 + $0x8] sm:$0xff]
      %v411 = vld [vmem:[#allocation10 + $0x10] sm:$0xff]
      %v412 = vld [vmem:[#allocation10 + $0x18] sm:$0xff]
      %v413 = vld [vmem:[#allocation10 + $0x20] sm:$0xff]
      %v414 = vld [vmem:[#allocation10 + $0x28] sm:$0xff]
      %v415 = vld [vmem:[#allocation10 + $0x30] sm:$0xff]
      %v416 = vld [vmem:[#allocation10 + $0x38] sm:$0xff]
      %v417 = vld [vmem:[#allocation10 + $0x40] sm:$0xff]
      %v418 = vld [vmem:[#allocation10 + $0x48] sm:$0xff]
      %v419 = vld [vmem:[#allocation10 + $0x50] sm:$0xff]
      %v420 = vld [vmem:[#allocation10 + $0x58] sm:$0xff]
      %v421 = vld [vmem:[#allocation10 + $0x60] sm:$0xff]
      %v422 = vld [vmem:[#allocation10 + $0x68] sm:$0xff]
      %v423 = vld [vmem:[#allocation10 + $0x70] sm:$0xff]
      %v424 = vld [vmem:[#allocation10 + $0x78] sm:$0xff]
      %v425 = vld [vmem:[#allocation10 + $0x80] sm:$0xff]
      %v426 = vld [vmem:[#allocation10 + $0x88] sm:$0xff]
      %v427 = vld [vmem:[#allocation10 + $0x90] sm:$0xff]
      %v428 = vld [vmem:[#allocation10 + $0x98] sm:$0xff]
      %v429 = vld [vmem:[#allocation10 + $0xa0] sm:$0xff]
      %v430 = vld [vmem:[#allocation10 + $0xa8] sm:$0xff]
      %v431 = vld [vmem:[#allocation10 + $0xb0] sm:$0xff]
      %v432 = vld [vmem:[#allocation10 + $0xb8] sm:$0xff]
      %v433 = vld [vmem:[#allocation10 + $0xc0] sm:$0xff]
      %v434 = vld [vmem:[#allocation10 + $0xc8] sm:$0xff]
      %v435 = vld [vmem:[#allocation10 + $0xd0] sm:$0xff]
      %v436 = vld [vmem:[#allocation10 + $0xd8] sm:$0xff]
      %v437 = vld [vmem:[#allocation10 + $0xe0] sm:$0xff]
      %v438 = vld [vmem:[#allocation10 + $0xe8] sm:$0xff]
      %v439 = vld [vmem:[#allocation10 + $0xf0] sm:$0xff]
      %v440 = vld [vmem:[#allocation10 + $0xf8] sm:$0xff]
      %v441 = vld [vmem:[#allocation10 + $0x100] sm:$0xff]
      %v442 = vld [vmem:[#allocation10 + $0x108] sm:$0xff]
      %v443 = vld [vmem:[#allocation10 + $0x110] sm:$0xff]
      %v444 = vld [vmem:[#allocation10 + $0x118] sm:$0xff]
      %v445 = vld [vmem:[#allocation10 + $0x120] sm:$0xff]
      %v446 = vld [vmem:[#allocation10 + $0x128] sm:$0xff]
      %v447 = vld [vmem:[#allocation10 + $0x130] sm:$0xff]
      %v448 = vld [vmem:[#allocation10 + $0x138] sm:$0xff]
      %v449 = vld [vmem:[#allocation10 + $0x140] sm:$0xff]
      %v450 = vld [vmem:[#allocation10 + $0x148] sm:$0xff]
      %v451 = vld [vmem:[#allocation10 + $0x150] sm:$0xff]
      %v452 = vld [vmem:[#allocation10 + $0x158] sm:$0xff]
      %v453 = vld [vmem:[#allocation10 + $0x160] sm:$0xff]
      %v454 = vld [vmem:[#allocation10 + $0x168] sm:$0xff]
      %v455 = vld [vmem:[#allocation10 + $0x170] sm:$0xff]
      %v456 = vld [vmem:[#allocation10 + $0x178] sm:$0xff]
      %v457 = vld [vmem:[#allocation10 + $0x180] sm:$0xff]
      %v458 = vld [vmem:[#allocation10 + $0x188] sm:$0xff]
      %v459 = vld [vmem:[#allocation10 + $0x190] sm:$0xff]
      %v460 = vld [vmem:[#allocation10 + $0x198] sm:$0xff]
      %v461 = vld [vmem:[#allocation10 + $0x1a0] sm:$0xff]
      %v462 = vld [vmem:[#allocation10 + $0x1a8] sm:$0xff]
      %v463 = vld [vmem:[#allocation10 + $0x1b0] sm:$0xff]
      %v464 = vld [vmem:[#allocation10 + $0x1b8] sm:$0xff]
      %v465 = vld [vmem:[#allocation10 + $0x1c0] sm:$0xff]
      %v466 = vld [vmem:[#allocation10 + $0x1c8] sm:$0xff]
      %v467 = vld [vmem:[#allocation10 + $0x1d0] sm:$0xff]
      %v468 = vld [vmem:[#allocation10 + $0x1d8] sm:$0xff]
      %v469 = vld [vmem:[#allocation10 + $0x1e0] sm:$0xff]
      %v470 = vld [vmem:[#allocation10 + $0x1e8] sm:$0xff]
      %v471 = vld [vmem:[#allocation10 + $0x1f0] sm:$0xff]
      %v472 = vld [vmem:[#allocation10 + $0x1f8] sm:$0xff]
      %v473 = vld [vmem:[#allocation12] sm:$0xff]
      %v474 = vld [vmem:[#allocation12 + $0x8] sm:$0xff]
      %v475 = vld [vmem:[#allocation12 + $0x10] sm:$0xff]
      %v476 = vld [vmem:[#allocation12 + $0x18] sm:$0xff]
      %v477 = vld [vmem:[#allocation12 + $0x20] sm:$0xff]
      %v478 = vld [vmem:[#allocation12 + $0x28] sm:$0xff]
      %v479 = vld [vmem:[#allocation12 + $0x30] sm:$0xff]
      %v480 = vld [vmem:[#allocation12 + $0x38] sm:$0xff]
      %v481 = vld [vmem:[#allocation12 + $0x40] sm:$0xff]
      %v482 = vld [vmem:[#allocation12 + $0x48] sm:$0xff]
      %v483 = vld [vmem:[#allocation12 + $0x50] sm:$0xff]
      %v484 = vld [vmem:[#allocation12 + $0x58] sm:$0xff]
      %v485 = vld [vmem:[#allocation12 + $0x60] sm:$0xff]
      %v486 = vld [vmem:[#allocation12 + $0x68] sm:$0xff]
      %v487 = vld [vmem:[#allocation12 + $0x70] sm:$0xff]
      %v488 = vld [vmem:[#allocation12 + $0x78] sm:$0xff]
      %v489 = vld [vmem:[#allocation12 + $0x80] sm:$0xff]
      %v490 = vld [vmem:[#allocation12 + $0x88] sm:$0xff]
      %v491 = vld [vmem:[#allocation12 + $0x90] sm:$0xff]
      %v492 = vld [vmem:[#allocation12 + $0x98] sm:$0xff]
      %v493 = vld [vmem:[#allocation12 + $0xa0] sm:$0xff]
      %v494 = vld [vmem:[#allocation12 + $0xa8] sm:$0xff]
      %v495 = vld [vmem:[#allocation12 + $0xb0] sm:$0xff]
      %v496 = vld [vmem:[#allocation12 + $0xb8] sm:$0xff]
      %v497 = vld [vmem:[#allocation12 + $0xc0] sm:$0xff]
      %v498 = vld [vmem:[#allocation12 + $0xc8] sm:$0xff]
      %v499 = vld [vmem:[#allocation12 + $0xd0] sm:$0xff]
      %v500 = vld [vmem:[#allocation12 + $0xd8] sm:$0xff]
      %v501 = vld [vmem:[#allocation12 + $0xe0] sm:$0xff]
      %v502 = vld [vmem:[#allocation12 + $0xe8] sm:$0xff]
      %v503 = vld [vmem:[#allocation12 + $0xf0] sm:$0xff]
      %v504 = vld [vmem:[#allocation12 + $0xf8] sm:$0xff]
      %v505 = vld [vmem:[#allocation12 + $0x100] sm:$0xff]
      %v506 = vld [vmem:[#allocation12 + $0x108] sm:$0xff]
      %v507 = vld [vmem:[#allocation12 + $0x110] sm:$0xff]
      %v508 = vld [vmem:[#allocation12 + $0x118] sm:$0xff]
      %v509 = vld [vmem:[#allocation12 + $0x120] sm:$0xff]
      %v510 = vld [vmem:[#allocation12 + $0x128] sm:$0xff]
      %v511 = vld [vmem:[#allocation12 + $0x130] sm:$0xff]
      %v512 = vld [vmem:[#allocation12 + $0x138] sm:$0xff]
      %v513 = vld [vmem:[#allocation12 + $0x140] sm:$0xff]
      %v514 = vld [vmem:[#allocation12 + $0x148] sm:$0xff]
      %v515 = vld [vmem:[#allocation12 + $0x150] sm:$0xff]
      %v516 = vld [vmem:[#allocation12 + $0x158] sm:$0xff]
      %v517 = vld [vmem:[#allocation12 + $0x160] sm:$0xff]
      %v518 = vld [vmem:[#allocation12 + $0x168] sm:$0xff]
      %v519 = vld [vmem:[#allocation12 + $0x170] sm:$0xff]
      %v520 = vld [vmem:[#allocation12 + $0x178] sm:$0xff]
      %v521 = vld [vmem:[#allocation12 + $0x180] sm:$0xff]
      %v522 = vld [vmem:[#allocation12 + $0x188] sm:$0xff]
      %v523 = vld [vmem:[#allocation12 + $0x190] sm:$0xff]
      %v524 = vld [vmem:[#allocation12 + $0x198] sm:$0xff]
      %v525 = vld [vmem:[#allocation12 + $0x1a0] sm:$0xff]
      %v526 = vld [vmem:[#allocation12 + $0x1a8] sm:$0xff]
      %v527 = vld [vmem:[#allocation12 + $0x1b0] sm:$0xff]
      %v528 = vld [vmem:[#allocation12 + $0x1b8] sm:$0xff]
      %v529 = vld [vmem:[#allocation12 + $0x1c0] sm:$0xff]
      %v530 = vld [vmem:[#allocation12 + $0x1c8] sm:$0xff]
      %v531 = vld [vmem:[#allocation12 + $0x1d0] sm:$0xff]
      %v532 = vld [vmem:[#allocation12 + $0x1d8] sm:$0xff]
      %v533 = vld [vmem:[#allocation12 + $0x1e0] sm:$0xff]
      %v534 = vld [vmem:[#allocation12 + $0x1e8] sm:$0xff]
      %v535 = vld [vmem:[#allocation12 + $0x1f0] sm:$0xff]
      %v536 = vld [vmem:[#allocation12 + $0x1f8] sm:$0xff]
      %537 = vmatprep.subr.mxu0 %v534
      %538 = vmatpush1.msra.mxu0 %v533
      %539 = vmatprep.subr.mxu0 %v530
      %540 = vmatpush1.msra.mxu0 %v529
      %541 = vmatprep.subr.mxu0 %v526
      %542 = vmatpush1.msra.mxu0 %v525
      %543 = vmatprep.subr.mxu0 %v522
      %544 = vmatpush1.msra.mxu0 %v521
      %545 = vmatprep.subr.mxu0 %v518
      %546 = vmatpush1.msra.mxu0 %v517
      %547 = vmatprep.subr.mxu0 %v514
      %548 = vmatpush1.msra.mxu0 %v513
      %549 = vmatprep.subr.mxu0 %v510
      %550 = vmatpush1.msra.mxu0 %v509
      %551 = vmatprep.subr.mxu0 %v506
      %552 = vmatpush1.msra.mxu0 %v505
      %553 = vmatprep.subr.mxu0 %v502
      %554 = vmatpush1.msra.mxu0 %v501
      %555 = vmatprep.subr.mxu0 %v498
      %556 = vmatpush1.msra.mxu0 %v497
      %557 = vmatprep.subr.mxu0 %v494
      %558 = vmatpush1.msra.mxu0 %v493
      %559 = vmatprep.subr.mxu0 %v490
      %560 = vmatpush1.msra.mxu0 %v489
      %561 = vmatprep.subr.mxu0 %v486
      %562 = vmatpush1.msra.mxu0 %v485
      %563 = vmatprep.subr.mxu0 %v482
      %564 = vmatpush1.msra.mxu0 %v481
      %565 = vmatprep.subr.mxu0 %v478
      %566 = vmatpush1.msra.mxu0 %v477
      %567 = vmatprep.subr.mxu0 %v474
      %568 = vmatpush1.msra.mxu0 %v473
      %569 = vmatprep.subr.mxu0 0.0
      %570 = vmatpush2.msra.mxu0 0.0
      %571 = vmatprep.subr.mxu0 0.0
      %572 = vmatpush2.msra.mxu0 0.0
      %573 = vmatprep.subr.mxu0 0.0
      %574 = vmatpush2.msra.mxu0 0.0
      %575 = vmatprep.subr.mxu0 0.0
      %576 = vmatpush2.msra.mxu0 0.0
      %577 = vmatprep.subr.mxu0 0.0
      %578 = vmatpush2.msra.mxu0 0.0
      %579 = vmatprep.subr.mxu0 0.0
      %580 = vmatpush2.msra.mxu0 0.0
      %581 = vmatprep.subr.mxu0 0.0
      %582 = vmatpush2.msra.mxu0 0.0
      %583 = vmatprep.subr.mxu0 0.0
      %584 = vmatpush2.msra.mxu0 0.0
      %585 = vmatprep.subr.mxu0 0.0
      %586 = vmatpush2.msra.mxu0 0.0
      %587 = vmatprep.subr.mxu0 0.0
      %588 = vmatpush2.msra.mxu0 0.0
      %589 = vmatprep.subr.mxu0 0.0
      %590 = vmatpush2.msra.mxu0 0.0
      %591 = vmatprep.subr.mxu0 0.0
      %592 = vmatpush2.msra.mxu0 0.0
      %593 = vmatprep.subr.mxu0 0.0
      %594 = vmatpush2.msra.mxu0 0.0
      %595 = vmatprep.subr.mxu0 0.0
      %596 = vmatpush2.msra.mxu0 0.0
      %597 = vmatprep.subr.mxu0 0.0
      %598 = vmatpush2.msra.mxu0 0.0
      %599 = vmatprep.subr.mxu0 0.0
      %600 = vmatpush2.msra.mxu0 0.0
      %601 = vmatprep.mubr.f32.mxu0 0.0
      %602 = vmatmul.mubr.f32.gmra.mxu0 %v221
      %v603 = vpop.f32.mrf.mxu0
      %v604 = vadd.f32 0.0, %v603
      %v605 = vpop.f32.mrf.mxu0
      %v606 = vadd.f32 0.0, %v605
      %607 = vdwg.mxu0
      %608 = vmatprep.subr.mxu0 %v536
      %609 = vmatpush1.msra.mxu0 %v535
      %610 = vmatprep.subr.mxu0 %v532
      %611 = vmatpush1.msra.mxu0 %v531
      %612 = vmatprep.subr.mxu0 %v528
      %613 = vmatpush1.msra.mxu0 %v527
      %614 = vmatprep.subr.mxu0 %v524
      %615 = vmatpush1.msra.mxu0 %v523
      %616 = vmatprep.subr.mxu0 %v520
      %617 = vmatpush1.msra.mxu0 %v519
      %618 = vmatprep.subr.mxu0 %v516
      %619 = vmatpush1.msra.mxu0 %v515
      %620 = vmatprep.subr.mxu0 %v512
      %621 = vmatpush1.msra.mxu0 %v511
      %622 = vmatprep.subr.mxu0 %v508
      %623 = vmatpush1.msra.mxu0 %v507
      %624 = vmatprep.subr.mxu0 %v504
      %625 = vmatpush1.msra.mxu0 %v503
      %626 = vmatprep.subr.mxu0 %v500
      %627 = vmatpush1.msra.mxu0 %v499
      %628 = vmatprep.subr.mxu0 %v496
      %629 = vmatpush1.msra.mxu0 %v495
      %630 = vmatprep.subr.mxu0 %v492
      %631 = vmatpush1.msra.mxu0 %v491
      %632 = vmatprep.subr.mxu0 %v488
      %633 = vmatpush1.msra.mxu0 %v487
      %634 = vmatprep.subr.mxu0 %v484
      %635 = vmatpush1.msra.mxu0 %v483
      %636 = vmatprep.subr.mxu0 %v480
      %637 = vmatpush1.msra.mxu0 %v479
      %638 = vmatprep.subr.mxu0 %v476
      %639 = vmatpush1.msra.mxu0 %v475
      %640 = vmatprep.subr.mxu0 0.0
      %641 = vmatpush2.msra.mxu0 0.0
      %642 = vmatprep.subr.mxu0 0.0
      %643 = vmatpush2.msra.mxu0 0.0
      %644 = vmatprep.subr.mxu0 0.0
      %645 = vmatpush2.msra.mxu0 0.0
      %646 = vmatprep.subr.mxu0 0.0
      %647 = vmatpush2.msra.mxu0 0.0
      %648 = vmatprep.subr.mxu0 0.0
      %649 = vmatpush2.msra.mxu0 0.0
      %650 = vmatprep.subr.mxu0 0.0
      %651 = vmatpush2.msra.mxu0 0.0
      %652 = vmatprep.subr.mxu0 0.0
      %653 = vmatpush2.msra.mxu0 0.0
      %654 = vmatprep.subr.mxu0 0.0
      %655 = vmatpush2.msra.mxu0 0.0
      %656 = vmatprep.subr.mxu0 0.0
      %657 = vmatpush2.msra.mxu0 0.0
      %658 = vmatprep.subr.mxu0 0.0
      %659 = vmatpush2.msra.mxu0 0.0
      %660 = vmatprep.subr.mxu0 0.0
      %661 = vmatpush2.msra.mxu0 0.0
      %662 = vmatprep.subr.mxu0 0.0
      %663 = vmatpush2.msra.mxu0 0.0
      %664 = vmatprep.subr.mxu0 0.0
      %665 = vmatpush2.msra.mxu0 0.0
      %666 = vmatprep.subr.mxu0 0.0
      %667 = vmatpush2.msra.mxu0 0.0
      %668 = vmatprep.subr.mxu0 0.0
      %669 = vmatpush2.msra.mxu0 0.0
      %670 = vmatprep.subr.mxu0 0.0
      %671 = vmatpush2.msra.mxu0 0.0
      %672 = vmatprep.mubr.f32.mxu0 0.0
      %673 = vmatmul.mubr.f32.gmra.mxu0 %v221
      %v674 = vpop.f32.mrf.mxu0
      %v675 = vadd.f32 0.0, %v674
      %v676 = vpop.f32.mrf.mxu0
      %v677 = vadd.f32 0.0, %v676
      %678 = vdwg.mxu0
      %679 = vmatprep.subr.mxu0 %v470
      %680 = vmatpush1.msra.mxu0 %v469
      %681 = vmatprep.subr.mxu0 %v466
      %682 = vmatpush1.msra.mxu0 %v465
      %683 = vmatprep.subr.mxu0 %v462
      %684 = vmatpush1.msra.mxu0 %v461
      %685 = vmatprep.subr.mxu0 %v458
      %686 = vmatpush1.msra.mxu0 %v457
      %687 = vmatprep.subr.mxu0 %v454
      %688 = vmatpush1.msra.mxu0 %v453
      %689 = vmatprep.subr.mxu0 %v450
      %690 = vmatpush1.msra.mxu0 %v449
      %691 = vmatprep.subr.mxu0 %v446
      %692 = vmatpush1.msra.mxu0 %v445
      %693 = vmatprep.subr.mxu0 %v442
      %694 = vmatpush1.msra.mxu0 %v441
      %695 = vmatprep.subr.mxu0 %v438
      %696 = vmatpush1.msra.mxu0 %v437
      %697 = vmatprep.subr.mxu0 %v434
      %698 = vmatpush1.msra.mxu0 %v433
      %699 = vmatprep.subr.mxu0 %v430
      %700 = vmatpush1.msra.mxu0 %v429
      %701 = vmatprep.subr.mxu0 %v426
      %702 = vmatpush1.msra.mxu0 %v425
      %703 = vmatprep.subr.mxu0 %v422
      %704 = vmatpush1.msra.mxu0 %v421
      %705 = vmatprep.subr.mxu0 %v418
      %706 = vmatpush1.msra.mxu0 %v417
      %707 = vmatprep.subr.mxu0 %v414
      %708 = vmatpush1.msra.mxu0 %v413
      %709 = vmatprep.subr.mxu0 %v410
      %710 = vmatpush1.msra.mxu0 %v409
      %711 = vmatprep.subr.mxu0 0.0
      %712 = vmatpush2.msra.mxu0 0.0
      %713 = vmatprep.subr.mxu0 0.0
      %714 = vmatpush2.msra.mxu0 0.0
      %715 = vmatprep.subr.mxu0 0.0
      %716 = vmatpush2.msra.mxu0 0.0
      %717 = vmatprep.subr.mxu0 0.0
      %718 = vmatpush2.msra.mxu0 0.0
      %719 = vmatprep.subr.mxu0 0.0
      %720 = vmatpush2.msra.mxu0 0.0
      %721 = vmatprep.subr.mxu0 0.0
      %722 = vmatpush2.msra.mxu0 0.0
      %723 = vmatprep.subr.mxu0 0.0
      %724 = vmatpush2.msra.mxu0 0.0
      %725 = vmatprep.subr.mxu0 0.0
      %726 = vmatpush2.msra.mxu0 0.0
      %727 = vmatprep.subr.mxu0 0.0
      %728 = vmatpush2.msra.mxu0 0.0
      %729 = vmatprep.subr.mxu0 0.0
      %730 = vmatpush2.msra.mxu0 0.0
      %731 = vmatprep.subr.mxu0 0.0
      %732 = vmatpush2.msra.mxu0 0.0
      %733 = vmatprep.subr.mxu0 0.0
      %734 = vmatpush2.msra.mxu0 0.0
      %735 = vmatprep.subr.mxu0 0.0
      %736 = vmatpush2.msra.mxu0 0.0
      %737 = vmatprep.subr.mxu0 0.0
      %738 = vmatpush2.msra.mxu0 0.0
      %739 = vmatprep.subr.mxu0 0.0
      %740 = vmatpush2.msra.mxu0 0.0
      %741 = vmatprep.subr.mxu0 0.0
      %742 = vmatpush2.msra.mxu0 0.0
      %743 = vmatprep.mubr.f32.mxu0 0.0
      %744 = vmatmul.mubr.f32.gmra.mxu0 %v408
      %v745 = vpop.f32.mrf.mxu0
      %v746 = vadd.f32 %v604, %v745
      %v747 = vpop.f32.mrf.mxu0
      %v748 = vadd.f32 %v606, %v747
      %749 = vdwg.mxu0
      %750 = vmatprep.subr.mxu0 %v472
      %751 = vmatpush1.msra.mxu0 %v471
      %752 = vmatprep.subr.mxu0 %v468
      %753 = vmatpush1.msra.mxu0 %v467
      %754 = vmatprep.subr.mxu0 %v464
      %755 = vmatpush1.msra.mxu0 %v463
      %756 = vmatprep.subr.mxu0 %v460
      %757 = vmatpush1.msra.mxu0 %v459
      %758 = vmatprep.subr.mxu0 %v456
      %759 = vmatpush1.msra.mxu0 %v455
      %760 = vmatprep.subr.mxu0 %v452
      %761 = vmatpush1.msra.mxu0 %v451
      %762 = vmatprep.subr.mxu0 %v448
      %763 = vmatpush1.msra.mxu0 %v447
      %764 = vmatprep.subr.mxu0 %v444
      %765 = vmatpush1.msra.mxu0 %v443
      %766 = vmatprep.subr.mxu0 %v440
      %767 = vmatpush1.msra.mxu0 %v439
      %768 = vmatprep.subr.mxu0 %v436
      %769 = vmatpush1.msra.mxu0 %v435
      %770 = vmatprep.subr.mxu0 %v432
      %771 = vmatpush1.msra.mxu0 %v431
      %772 = vmatprep.subr.mxu0 %v428
      %773 = vmatpush1.msra.mxu0 %v427
      %774 = vmatprep.subr.mxu0 %v424
      %775 = vmatpush1.msra.mxu0 %v423
      %776 = vmatprep.subr.mxu0 %v420
      %777 = vmatpush1.msra.mxu0 %v419
      %778 = vmatprep.subr.mxu0 %v416
      %779 = vmatpush1.msra.mxu0 %v415
      %780 = vmatprep.subr.mxu0 %v412
      %781 = vmatpush1.msra.mxu0 %v411
      %782 = vmatprep.subr.mxu0 0.0
      %783 = vmatpush2.msra.mxu0 0.0
      %784 = vmatprep.subr.mxu0 0.0
      %785 = vmatpush2.msra.mxu0 0.0
      %786 = vmatprep.subr.mxu0 0.0
      %787 = vmatpush2.msra.mxu0 0.0
      %788 = vmatprep.subr.mxu0 0.0
      %789 = vmatpush2.msra.mxu0 0.0
      %790 = vmatprep.subr.mxu0 0.0
      %791 = vmatpush2.msra.mxu0 0.0
      %792 = vmatprep.subr.mxu0 0.0
      %793 = vmatpush2.msra.mxu0 0.0
      %794 = vmatprep.subr.mxu0 0.0
      %795 = vmatpush2.msra.mxu0 0.0
      %796 = vmatprep.subr.mxu0 0.0
      %797 = vmatpush2.msra.mxu0 0.0
      %798 = vmatprep.subr.mxu0 0.0
      %799 = vmatpush2.msra.mxu0 0.0
      %800 = vmatprep.subr.mxu0 0.0
      %801 = vmatpush2.msra.mxu0 0.0
      %802 = vmatprep.subr.mxu0 0.0
      %803 = vmatpush2.msra.mxu0 0.0
      %804 = vmatprep.subr.mxu0 0.0
      %805 = vmatpush2.msra.mxu0 0.0
      %806 = vmatprep.subr.mxu0 0.0
      %807 = vmatpush2.msra.mxu0 0.0
      %808 = vmatprep.subr.mxu0 0.0
      %809 = vmatpush2.msra.mxu0 0.0
      %810 = vmatprep.subr.mxu0 0.0
      %811 = vmatpush2.msra.mxu0 0.0
      %812 = vmatprep.subr.mxu0 0.0
      %813 = vmatpush2.msra.mxu0 0.0
      %814 = vmatprep.mubr.f32.mxu0 0.0
      %815 = vmatmul.mubr.f32.gmra.mxu0 %v408
      %v816 = vpop.f32.mrf.mxu0
      %v817 = vadd.f32 %v675, %v816
      %v818 = vpop.f32.mrf.mxu0
      %v819 = vadd.f32 %v677, %v818
      %820 = vdwg.mxu0
      %v821 = vadd.f32 %v746, %v175
      %v822 = vadd.f32 %v748, %v179
      %v823 = vadd.f32 %v817, %v183
      %v824 = vadd.f32 %v819, %v187
      %v825 = vxor.u32 %v821, 2147483648
      %v826 = vmul.f32 %v825, 1.442695
      %v827 = vpow.pop %v826
      %v828 = vadd.f32 %v827, 1.0
      %v829 = vrcp.pop %v828
      %v830 = vmul.f32 1.0, %v829
      %v831 = vxor.u32 %v822, 2147483648
      %v832 = vmul.f32 %v831, 1.442695
      %v833 = vpow.pop %v832
      %v834 = vadd.f32 %v833, 1.0
      %v835 = vrcp.pop %v834
      %v836 = vmul.f32 1.0, %v835
      %v837 = vtanh.pop %v823
      %v838 = vxor.u32 %v824, 2147483648
      %v839 = vmul.f32 %v838, 1.442695
      %v840 = vpow.pop %v839
      %v841 = vadd.f32 %v840, 1.0
      %v842 = vrcp.pop %v841
      %v843 = vmul.f32 1.0, %v842
      %v844 = vmul.f32 %v836, %v223
      %v845 = vmul.f32 %v830, %v837
      %v846 = vadd.f32 %v844, %v845
      %v847 = vtanh.pop %v846
      %v848 = vmul.f32 %v843, %v847
      %s849 = scalar_lea.vmem [#allocation10], 512
      %v850 = vld [vmem:[%s849] sm:$0xff]
      %v851 = vld [vmem:[%s849 + $0x8] sm:$0xff]
      %v852 = vld [vmem:[%s849 + $0x10] sm:$0xff]
      %v853 = vld [vmem:[%s849 + $0x18] sm:$0xff]
      %v854 = vld [vmem:[%s849 + $0x20] sm:$0xff]
      %v855 = vld [vmem:[%s849 + $0x28] sm:$0xff]
      %v856 = vld [vmem:[%s849 + $0x30] sm:$0xff]
      %v857 = vld [vmem:[%s849 + $0x38] sm:$0xff]
      %v858 = vld [vmem:[%s849 + $0x40] sm:$0xff]
      %v859 = vld [vmem:[%s849 + $0x48] sm:$0xff]
      %v860 = vld [vmem:[%s849 + $0x50] sm:$0xff]
      %v861 = vld [vmem:[%s849 + $0x58] sm:$0xff]
      %v862 = vld [vmem:[%s849 + $0x60] sm:$0xff]
      %v863 = vld [vmem:[%s849 + $0x68] sm:$0xff]
      %v864 = vld [vmem:[%s849 + $0x70] sm:$0xff]
      %v865 = vld [vmem:[%s849 + $0x78] sm:$0xff]
      %v866 = vld [vmem:[%s849 + $0x80] sm:$0xff]
      %v867 = vld [vmem:[%s849 + $0x88] sm:$0xff]
      %v868 = vld [vmem:[%s849 + $0x90] sm:$0xff]
      %v869 = vld [vmem:[%s849 + $0x98] sm:$0xff]
      %v870 = vld [vmem:[%s849 + $0xa0] sm:$0xff]
      %v871 = vld [vmem:[%s849 + $0xa8] sm:$0xff]
      %v872 = vld [vmem:[%s849 + $0xb0] sm:$0xff]
      %v873 = vld [vmem:[%s849 + $0xb8] sm:$0xff]
      %v874 = vld [vmem:[%s849 + $0xc0] sm:$0xff]
      %v875 = vld [vmem:[%s849 + $0xc8] sm:$0xff]
      %v876 = vld [vmem:[%s849 + $0xd0] sm:$0xff]
      %v877 = vld [vmem:[%s849 + $0xd8] sm:$0xff]
      %v878 = vld [vmem:[%s849 + $0xe0] sm:$0xff]
      %v879 = vld [vmem:[%s849 + $0xe8] sm:$0xff]
      %v880 = vld [vmem:[%s849 + $0xf0] sm:$0xff]
      %v881 = vld [vmem:[%s849 + $0xf8] sm:$0xff]
      %v882 = vld [vmem:[%s849 + $0x100] sm:$0xff]
      %v883 = vld [vmem:[%s849 + $0x108] sm:$0xff]
      %v884 = vld [vmem:[%s849 + $0x110] sm:$0xff]
      %v885 = vld [vmem:[%s849 + $0x118] sm:$0xff]
      %v886 = vld [vmem:[%s849 + $0x120] sm:$0xff]
      %v887 = vld [vmem:[%s849 + $0x128] sm:$0xff]
      %v888 = vld [vmem:[%s849 + $0x130] sm:$0xff]
      %v889 = vld [vmem:[%s849 + $0x138] sm:$0xff]
      %v890 = vld [vmem:[%s849 + $0x140] sm:$0xff]
      %v891 = vld [vmem:[%s849 + $0x148] sm:$0xff]
      %v892 = vld [vmem:[%s849 + $0x150] sm:$0xff]
      %v893 = vld [vmem:[%s849 + $0x158] sm:$0xff]
      %v894 = vld [vmem:[%s849 + $0x160] sm:$0xff]
      %v895 = vld [vmem:[%s849 + $0x168] sm:$0xff]
      %v896 = vld [vmem:[%s849 + $0x170] sm:$0xff]
      %v897 = vld [vmem:[%s849 + $0x178] sm:$0xff]
      %v898 = vld [vmem:[%s849 + $0x180] sm:$0xff]
      %v899 = vld [vmem:[%s849 + $0x188] sm:$0xff]
      %v900 = vld [vmem:[%s849 + $0x190] sm:$0xff]
      %v901 = vld [vmem:[%s849 + $0x198] sm:$0xff]
      %v902 = vld [vmem:[%s849 + $0x1a0] sm:$0xff]
      %v903 = vld [vmem:[%s849 + $0x1a8] sm:$0xff]
      %v904 = vld [vmem:[%s849 + $0x1b0] sm:$0xff]
      %v905 = vld [vmem:[%s849 + $0x1b8] sm:$0xff]
      %v906 = vld [vmem:[%s849 + $0x1c0] sm:$0xff]
      %v907 = vld [vmem:[%s849 + $0x1c8] sm:$0xff]
      %v908 = vld [vmem:[%s849 + $0x1d0] sm:$0xff]
      %v909 = vld [vmem:[%s849 + $0x1d8] sm:$0xff]
      %v910 = vld [vmem:[%s849 + $0x1e0] sm:$0xff]
      %v911 = vld [vmem:[%s849 + $0x1e8] sm:$0xff]
      %v912 = vld [vmem:[%s849 + $0x1f0] sm:$0xff]
      %v913 = vld [vmem:[%s849 + $0x1f8] sm:$0xff]
      %s914 = scalar_lea.vmem [#allocation12], 512
      %v915 = vld [vmem:[%s914] sm:$0xff]
      %v916 = vld [vmem:[%s914 + $0x8] sm:$0xff]
      %v917 = vld [vmem:[%s914 + $0x10] sm:$0xff]
      %v918 = vld [vmem:[%s914 + $0x18] sm:$0xff]
      %v919 = vld [vmem:[%s914 + $0x20] sm:$0xff]
      %v920 = vld [vmem:[%s914 + $0x28] sm:$0xff]
      %v921 = vld [vmem:[%s914 + $0x30] sm:$0xff]
      %v922 = vld [vmem:[%s914 + $0x38] sm:$0xff]
      %v923 = vld [vmem:[%s914 + $0x40] sm:$0xff]
      %v924 = vld [vmem:[%s914 + $0x48] sm:$0xff]
      %v925 = vld [vmem:[%s914 + $0x50] sm:$0xff]
      %v926 = vld [vmem:[%s914 + $0x58] sm:$0xff]
      %v927 = vld [vmem:[%s914 + $0x60] sm:$0xff]
      %v928 = vld [vmem:[%s914 + $0x68] sm:$0xff]
      %v929 = vld [vmem:[%s914 + $0x70] sm:$0xff]
      %v930 = vld [vmem:[%s914 + $0x78] sm:$0xff]
      %v931 = vld [vmem:[%s914 + $0x80] sm:$0xff]
      %v932 = vld [vmem:[%s914 + $0x88] sm:$0xff]
      %v933 = vld [vmem:[%s914 + $0x90] sm:$0xff]
      %v934 = vld [vmem:[%s914 + $0x98] sm:$0xff]
      %v935 = vld [vmem:[%s914 + $0xa0] sm:$0xff]
      %v936 = vld [vmem:[%s914 + $0xa8] sm:$0xff]
      %v937 = vld [vmem:[%s914 + $0xb0] sm:$0xff]
      %v938 = vld [vmem:[%s914 + $0xb8] sm:$0xff]
      %v939 = vld [vmem:[%s914 + $0xc0] sm:$0xff]
      %v940 = vld [vmem:[%s914 + $0xc8] sm:$0xff]
      %v941 = vld [vmem:[%s914 + $0xd0] sm:$0xff]
      %v942 = vld [vmem:[%s914 + $0xd8] sm:$0xff]
      %v943 = vld [vmem:[%s914 + $0xe0] sm:$0xff]
      %v944 = vld [vmem:[%s914 + $0xe8] sm:$0xff]
      %v945 = vld [vmem:[%s914 + $0xf0] sm:$0xff]
      %v946 = vld [vmem:[%s914 + $0xf8] sm:$0xff]
      %v947 = vld [vmem:[%s914 + $0x100] sm:$0xff]
      %v948 = vld [vmem:[%s914 + $0x108] sm:$0xff]
      %v949 = vld [vmem:[%s914 + $0x110] sm:$0xff]
      %v950 = vld [vmem:[%s914 + $0x118] sm:$0xff]
      %v951 = vld [vmem:[%s914 + $0x120] sm:$0xff]
      %v952 = vld [vmem:[%s914 + $0x128] sm:$0xff]
      %v953 = vld [vmem:[%s914 + $0x130] sm:$0xff]
      %v954 = vld [vmem:[%s914 + $0x138] sm:$0xff]
      %v955 = vld [vmem:[%s914 + $0x140] sm:$0xff]
      %v956 = vld [vmem:[%s914 + $0x148] sm:$0xff]
      %v957 = vld [vmem:[%s914 + $0x150] sm:$0xff]
      %v958 = vld [vmem:[%s914 + $0x158] sm:$0xff]
      %v959 = vld [vmem:[%s914 + $0x160] sm:$0xff]
      %v960 = vld [vmem:[%s914 + $0x168] sm:$0xff]
      %v961 = vld [vmem:[%s914 + $0x170] sm:$0xff]
      %v962 = vld [vmem:[%s914 + $0x178] sm:$0xff]
      %v963 = vld [vmem:[%s914 + $0x180] sm:$0xff]
      %v964 = vld [vmem:[%s914 + $0x188] sm:$0xff]
      %v965 = vld [vmem:[%s914 + $0x190] sm:$0xff]
      %v966 = vld [vmem:[%s914 + $0x198] sm:$0xff]
      %v967 = vld [vmem:[%s914 + $0x1a0] sm:$0xff]
      %v968 = vld [vmem:[%s914 + $0x1a8] sm:$0xff]
      %v969 = vld [vmem:[%s914 + $0x1b0] sm:$0xff]
      %v970 = vld [vmem:[%s914 + $0x1b8] sm:$0xff]
      %v971 = vld [vmem:[%s914 + $0x1c0] sm:$0xff]
      %v972 = vld [vmem:[%s914 + $0x1c8] sm:$0xff]
      %v973 = vld [vmem:[%s914 + $0x1d0] sm:$0xff]
      %v974 = vld [vmem:[%s914 + $0x1d8] sm:$0xff]
      %v975 = vld [vmem:[%s914 + $0x1e0] sm:$0xff]
      %v976 = vld [vmem:[%s914 + $0x1e8] sm:$0xff]
      %v977 = vld [vmem:[%s914 + $0x1f0] sm:$0xff]
      %v978 = vld [vmem:[%s914 + $0x1f8] sm:$0xff]
      %979 = vmatprep.subr.mxu0 %v976
      %980 = vmatpush1.msra.mxu0 %v975
      %981 = vmatprep.subr.mxu0 %v972
      %982 = vmatpush1.msra.mxu0 %v971
      %983 = vmatprep.subr.mxu0 %v968
      %984 = vmatpush1.msra.mxu0 %v967
      %985 = vmatprep.subr.mxu0 %v964
      %986 = vmatpush1.msra.mxu0 %v963
      %987 = vmatprep.subr.mxu0 %v960
      %988 = vmatpush1.msra.mxu0 %v959
      %989 = vmatprep.subr.mxu0 %v956
      %990 = vmatpush1.msra.mxu0 %v955
      %991 = vmatprep.subr.mxu0 %v952
      %992 = vmatpush1.msra.mxu0 %v951
      %993 = vmatprep.subr.mxu0 %v948
      %994 = vmatpush1.msra.mxu0 %v947
      %995 = vmatprep.subr.mxu0 %v944
      %996 = vmatpush1.msra.mxu0 %v943
      %997 = vmatprep.subr.mxu0 %v940
      %998 = vmatpush1.msra.mxu0 %v939
      %999 = vmatprep.subr.mxu0 %v936
      %1000 = vmatpush1.msra.mxu0 %v935
      %1001 = vmatprep.subr.mxu0 %v932
      %1002 = vmatpush1.msra.mxu0 %v931
      %1003 = vmatprep.subr.mxu0 %v928
      %1004 = vmatpush1.msra.mxu0 %v927
      %1005 = vmatprep.subr.mxu0 %v924
      %1006 = vmatpush1.msra.mxu0 %v923
      %1007 = vmatprep.subr.mxu0 %v920
      %1008 = vmatpush1.msra.mxu0 %v919
      %1009 = vmatprep.subr.mxu0 %v916
      %1010 = vmatpush1.msra.mxu0 %v915
      %1011 = vmatprep.subr.mxu0 0.0
      %1012 = vmatpush2.msra.mxu0 0.0
      %1013 = vmatprep.subr.mxu0 0.0
      %1014 = vmatpush2.msra.mxu0 0.0
      %1015 = vmatprep.subr.mxu0 0.0
      %1016 = vmatpush2.msra.mxu0 0.0
      %1017 = vmatprep.subr.mxu0 0.0
      %1018 = vmatpush2.msra.mxu0 0.0
      %1019 = vmatprep.subr.mxu0 0.0
      %1020 = vmatpush2.msra.mxu0 0.0
      %1021 = vmatprep.subr.mxu0 0.0
      %1022 = vmatpush2.msra.mxu0 0.0
      %1023 = vmatprep.subr.mxu0 0.0
      %1024 = vmatpush2.msra.mxu0 0.0
      %1025 = vmatprep.subr.mxu0 0.0
      %1026 = vmatpush2.msra.mxu0 0.0
      %1027 = vmatprep.subr.mxu0 0.0
      %1028 = vmatpush2.msra.mxu0 0.0
      %1029 = vmatprep.subr.mxu0 0.0
      %1030 = vmatpush2.msra.mxu0 0.0
      %1031 = vmatprep.subr.mxu0 0.0
      %1032 = vmatpush2.msra.mxu0 0.0
      %1033 = vmatprep.subr.mxu0 0.0
      %1034 = vmatpush2.msra.mxu0 0.0
      %1035 = vmatprep.subr.mxu0 0.0
      %1036 = vmatpush2.msra.mxu0 0.0
      %1037 = vmatprep.subr.mxu0 0.0
      %1038 = vmatpush2.msra.mxu0 0.0
      %1039 = vmatprep.subr.mxu0 0.0
      %1040 = vmatpush2.msra.mxu0 0.0
      %1041 = vmatprep.subr.mxu0 0.0
      %1042 = vmatpush2.msra.mxu0 0.0
      %1043 = vmatprep.mubr.f32.mxu0 0.0
      %1044 = vmatmul.mubr.f32.gmra.mxu0 %v222
      %v1045 = vpop.f32.mrf.mxu0
      %v1046 = vadd.f32 0.0, %v1045
      %v1047 = vpop.f32.mrf.mxu0
      %v1048 = vadd.f32 0.0, %v1047
      %1049 = vdwg.mxu0
      %1050 = vmatprep.subr.mxu0 %v978
      %1051 = vmatpush1.msra.mxu0 %v977
      %1052 = vmatprep.subr.mxu0 %v974
      %1053 = vmatpush1.msra.mxu0 %v973
      %1054 = vmatprep.subr.mxu0 %v970
      %1055 = vmatpush1.msra.mxu0 %v969
      %1056 = vmatprep.subr.mxu0 %v966
      %1057 = vmatpush1.msra.mxu0 %v965
      %1058 = vmatprep.subr.mxu0 %v962
      %1059 = vmatpush1.msra.mxu0 %v961
      %1060 = vmatprep.subr.mxu0 %v958
      %1061 = vmatpush1.msra.mxu0 %v957
      %1062 = vmatprep.subr.mxu0 %v954
      %1063 = vmatpush1.msra.mxu0 %v953
      %1064 = vmatprep.subr.mxu0 %v950
      %1065 = vmatpush1.msra.mxu0 %v949
      %1066 = vmatprep.subr.mxu0 %v946
      %1067 = vmatpush1.msra.mxu0 %v945
      %1068 = vmatprep.subr.mxu0 %v942
      %1069 = vmatpush1.msra.mxu0 %v941
      %1070 = vmatprep.subr.mxu0 %v938
      %1071 = vmatpush1.msra.mxu0 %v937
      %1072 = vmatprep.subr.mxu0 %v934
      %1073 = vmatpush1.msra.mxu0 %v933
      %1074 = vmatprep.subr.mxu0 %v930
      %1075 = vmatpush1.msra.mxu0 %v929
      %1076 = vmatprep.subr.mxu0 %v926
      %1077 = vmatpush1.msra.mxu0 %v925
      %1078 = vmatprep.subr.mxu0 %v922
      %1079 = vmatpush1.msra.mxu0 %v921
      %1080 = vmatprep.subr.mxu0 %v918
      %1081 = vmatpush1.msra.mxu0 %v917
      %1082 = vmatprep.subr.mxu0 0.0
      %1083 = vmatpush2.msra.mxu0 0.0
      %1084 = vmatprep.subr.mxu0 0.0
      %1085 = vmatpush2.msra.mxu0 0.0
      %1086 = vmatprep.subr.mxu0 0.0
      %1087 = vmatpush2.msra.mxu0 0.0
      %1088 = vmatprep.subr.mxu0 0.0
      %1089 = vmatpush2.msra.mxu0 0.0
      %1090 = vmatprep.subr.mxu0 0.0
      %1091 = vmatpush2.msra.mxu0 0.0
      %1092 = vmatprep.subr.mxu0 0.0
      %1093 = vmatpush2.msra.mxu0 0.0
      %1094 = vmatprep.subr.mxu0 0.0
      %1095 = vmatpush2.msra.mxu0 0.0
      %1096 = vmatprep.subr.mxu0 0.0
      %1097 = vmatpush2.msra.mxu0 0.0
      %1098 = vmatprep.subr.mxu0 0.0
      %1099 = vmatpush2.msra.mxu0 0.0
      %1100 = vmatprep.subr.mxu0 0.0
      %1101 = vmatpush2.msra.mxu0 0.0
      %1102 = vmatprep.subr.mxu0 0.0
      %1103 = vmatpush2.msra.mxu0 0.0
      %1104 = vmatprep.subr.mxu0 0.0
      %1105 = vmatpush2.msra.mxu0 0.0
      %1106 = vmatprep.subr.mxu0 0.0
      %1107 = vmatpush2.msra.mxu0 0.0
      %1108 = vmatprep.subr.mxu0 0.0
      %1109 = vmatpush2.msra.mxu0 0.0
      %1110 = vmatprep.subr.mxu0 0.0
      %1111 = vmatpush2.msra.mxu0 0.0
      %1112 = vmatprep.subr.mxu0 0.0
      %1113 = vmatpush2.msra.mxu0 0.0
      %1114 = vmatprep.mubr.f32.mxu0 0.0
      %1115 = vmatmul.mubr.f32.gmra.mxu0 %v222
      %v1116 = vpop.f32.mrf.mxu0
      %v1117 = vadd.f32 0.0, %v1116
      %v1118 = vpop.f32.mrf.mxu0
      %v1119 = vadd.f32 0.0, %v1118
      %1120 = vdwg.mxu0
      %1121 = vmatprep.subr.mxu0 %v911
      %1122 = vmatpush1.msra.mxu0 %v910
      %1123 = vmatprep.subr.mxu0 %v907
      %1124 = vmatpush1.msra.mxu0 %v906
      %1125 = vmatprep.subr.mxu0 %v903
      %1126 = vmatpush1.msra.mxu0 %v902
      %1127 = vmatprep.subr.mxu0 %v899
      %1128 = vmatpush1.msra.mxu0 %v898
      %1129 = vmatprep.subr.mxu0 %v895
      %1130 = vmatpush1.msra.mxu0 %v894
      %1131 = vmatprep.subr.mxu0 %v891
      %1132 = vmatpush1.msra.mxu0 %v890
      %1133 = vmatprep.subr.mxu0 %v887
      %1134 = vmatpush1.msra.mxu0 %v886
      %1135 = vmatprep.subr.mxu0 %v883
      %1136 = vmatpush1.msra.mxu0 %v882
      %1137 = vmatprep.subr.mxu0 %v879
      %1138 = vmatpush1.msra.mxu0 %v878
      %1139 = vmatprep.subr.mxu0 %v875
      %1140 = vmatpush1.msra.mxu0 %v874
      %1141 = vmatprep.subr.mxu0 %v871
      %1142 = vmatpush1.msra.mxu0 %v870
      %1143 = vmatprep.subr.mxu0 %v867
      %1144 = vmatpush1.msra.mxu0 %v866
      %1145 = vmatprep.subr.mxu0 %v863
      %1146 = vmatpush1.msra.mxu0 %v862
      %1147 = vmatprep.subr.mxu0 %v859
      %1148 = vmatpush1.msra.mxu0 %v858
      %1149 = vmatprep.subr.mxu0 %v855
      %1150 = vmatpush1.msra.mxu0 %v854
      %1151 = vmatprep.subr.mxu0 %v851
      %1152 = vmatpush1.msra.mxu0 %v850
      %1153 = vmatprep.subr.mxu0 0.0
      %1154 = vmatpush2.msra.mxu0 0.0
      %1155 = vmatprep.subr.mxu0 0.0
      %1156 = vmatpush2.msra.mxu0 0.0
      %1157 = vmatprep.subr.mxu0 0.0
      %1158 = vmatpush2.msra.mxu0 0.0
      %1159 = vmatprep.subr.mxu0 0.0
      %1160 = vmatpush2.msra.mxu0 0.0
      %1161 = vmatprep.subr.mxu0 0.0
      %1162 = vmatpush2.msra.mxu0 0.0
      %1163 = vmatprep.subr.mxu0 0.0
      %1164 = vmatpush2.msra.mxu0 0.0
      %1165 = vmatprep.subr.mxu0 0.0
      %1166 = vmatpush2.msra.mxu0 0.0
      %1167 = vmatprep.subr.mxu0 0.0
      %1168 = vmatpush2.msra.mxu0 0.0
      %1169 = vmatprep.subr.mxu0 0.0
      %1170 = vmatpush2.msra.mxu0 0.0
      %1171 = vmatprep.subr.mxu0 0.0
      %1172 = vmatpush2.msra.mxu0 0.0
      %1173 = vmatprep.subr.mxu0 0.0
      %1174 = vmatpush2.msra.mxu0 0.0
      %1175 = vmatprep.subr.mxu0 0.0
      %1176 = vmatpush2.msra.mxu0 0.0
      %1177 = vmatprep.subr.mxu0 0.0
      %1178 = vmatpush2.msra.mxu0 0.0
      %1179 = vmatprep.subr.mxu0 0.0
      %1180 = vmatpush2.msra.mxu0 0.0
      %1181 = vmatprep.subr.mxu0 0.0
      %1182 = vmatpush2.msra.mxu0 0.0
      %1183 = vmatprep.subr.mxu0 0.0
      %1184 = vmatpush2.msra.mxu0 0.0
      %1185 = vmatprep.mubr.f32.mxu0 0.0
      %1186 = vmatmul.mubr.f32.gmra.mxu0 %v848
      %v1187 = vpop.f32.mrf.mxu0
      %v1188 = vadd.f32 %v1046, %v1187
      %v1189 = vpop.f32.mrf.mxu0
      %v1190 = vadd.f32 %v1048, %v1189
      %1191 = vdwg.mxu0
      %1192 = vmatprep.subr.mxu0 %v913
      %1193 = vmatpush1.msra.mxu0 %v912
      %1194 = vmatprep.subr.mxu0 %v909
      %1195 = vmatpush1.msra.mxu0 %v908
      %1196 = vmatprep.subr.mxu0 %v905
      %1197 = vmatpush1.msra.mxu0 %v904
      %1198 = vmatprep.subr.mxu0 %v901
      %1199 = vmatpush1.msra.mxu0 %v900
      %1200 = vmatprep.subr.mxu0 %v897
      %1201 = vmatpush1.msra.mxu0 %v896
      %1202 = vmatprep.subr.mxu0 %v893
      %1203 = vmatpush1.msra.mxu0 %v892
      %1204 = vmatprep.subr.mxu0 %v889
      %1205 = vmatpush1.msra.mxu0 %v888
      %1206 = vmatprep.subr.mxu0 %v885
      %1207 = vmatpush1.msra.mxu0 %v884
      %1208 = vmatprep.subr.mxu0 %v881
      %1209 = vmatpush1.msra.mxu0 %v880
      %1210 = vmatprep.subr.mxu0 %v877
      %1211 = vmatpush1.msra.mxu0 %v876
      %1212 = vmatprep.subr.mxu0 %v873
      %1213 = vmatpush1.msra.mxu0 %v872
      %1214 = vmatprep.subr.mxu0 %v869
      %1215 = vmatpush1.msra.mxu0 %v868
      %1216 = vmatprep.subr.mxu0 %v865
      %1217 = vmatpush1.msra.mxu0 %v864
      %1218 = vmatprep.subr.mxu0 %v861
      %1219 = vmatpush1.msra.mxu0 %v860
      %1220 = vmatprep.subr.mxu0 %v857
      %1221 = vmatpush1.msra.mxu0 %v856
      %1222 = vmatprep.subr.mxu0 %v853
      %1223 = vmatpush1.msra.mxu0 %v852
      %1224 = vmatprep.subr.mxu0 0.0
      %1225 = vmatpush2.msra.mxu0 0.0
      %1226 = vmatprep.subr.mxu0 0.0
      %1227 = vmatpush2.msra.mxu0 0.0
      %1228 = vmatprep.subr.mxu0 0.0
      %1229 = vmatpush2.msra.mxu0 0.0
      %1230 = vmatprep.subr.mxu0 0.0
      %1231 = vmatpush2.msra.mxu0 0.0
      %1232 = vmatprep.subr.mxu0 0.0
      %1233 = vmatpush2.msra.mxu0 0.0
      %1234 = vmatprep.subr.mxu0 0.0
      %1235 = vmatpush2.msra.mxu0 0.0
      %1236 = vmatprep.subr.mxu0 0.0
      %1237 = vmatpush2.msra.mxu0 0.0
      %1238 = vmatprep.subr.mxu0 0.0
      %1239 = vmatpush2.msra.mxu0 0.0
      %1240 = vmatprep.subr.mxu0 0.0
      %1241 = vmatpush2.msra.mxu0 0.0
      %1242 = vmatprep.subr.mxu0 0.0
      %1243 = vmatpush2.msra.mxu0 0.0
      %1244 = vmatprep.subr.mxu0 0.0
      %1245 = vmatpush2.msra.mxu0 0.0
      %1246 = vmatprep.subr.mxu0 0.0
      %1247 = vmatpush2.msra.mxu0 0.0
      %1248 = vmatprep.subr.mxu0 0.0
      %1249 = vmatpush2.msra.mxu0 0.0
      %1250 = vmatprep.subr.mxu0 0.0
      %1251 = vmatpush2.msra.mxu0 0.0
      %1252 = vmatprep.subr.mxu0 0.0
      %1253 = vmatpush2.msra.mxu0 0.0
      %1254 = vmatprep.subr.mxu0 0.0
      %1255 = vmatpush2.msra.mxu0 0.0
      %1256 = vmatprep.mubr.f32.mxu0 0.0
      %1257 = vmatmul.mubr.f32.gmra.mxu0 %v848
      %v1258 = vpop.f32.mrf.mxu0
      %v1259 = vadd.f32 %v1117, %v1258
      %v1260 = vpop.f32.mrf.mxu0
      %v1261 = vadd.f32 %v1119, %v1260
      %1262 = vdwg.mxu0
      %v1263 = vadd.f32 %v1188, %v198
      %v1264 = vadd.f32 %v1190, %v202
      %v1265 = vadd.f32 %v1259, %v206
      %v1266 = vadd.f32 %v1261, %v210
      %v1267 = vxor.u32 %v1263, 2147483648
      %v1268 = vmul.f32 %v1267, 1.442695
      %v1269 = vpow.pop %v1268
      %v1270 = vadd.f32 %v1269, 1.0
      %v1271 = vrcp.pop %v1270
      %v1272 = vmul.f32 1.0, %v1271
      %v1273 = vxor.u32 %v1264, 2147483648
      %v1274 = vmul.f32 %v1273, 1.442695
      %v1275 = vpow.pop %v1274
      %v1276 = vadd.f32 %v1275, 1.0
      %v1277 = vrcp.pop %v1276
      %v1278 = vmul.f32 1.0, %v1277
      %v1279 = vtanh.pop %v1265
      %v1280 = vxor.u32 %v1266, 2147483648
      %v1281 = vmul.f32 %v1280, 1.442695
      %v1282 = vpow.pop %v1281
      %v1283 = vadd.f32 %v1282, 1.0
      %v1284 = vrcp.pop %v1283
      %v1285 = vmul.f32 1.0, %v1284
      %v1286 = vmul.f32 %v1278, %v224
      %v1287 = vmul.f32 %v1272, %v1279
      %v1288 = vadd.f32 %v1286, %v1287
      %v1289 = vtanh.pop %v1288
      %v1290 = vmul.f32 %v1285, %v1289
      %v1291 = vld [vmem:[#allocation13] sm:$0xff]
      %v1292 = vld [vmem:[#allocation13 + $0x8] sm:$0xff]
      %v1293 = vld [vmem:[#allocation13 + $0x10] sm:$0xff]
      %v1294 = vld [vmem:[#allocation13 + $0x18] sm:$0xff]
      %v1295 = vld [vmem:[#allocation13 + $0x20] sm:$0xff]
      %v1296 = vld [vmem:[#allocation13 + $0x28] sm:$0xff]
      %v1297 = vld [vmem:[#allocation13 + $0x30] sm:$0xff]
      %v1298 = vld [vmem:[#allocation13 + $0x38] sm:$0xff]
      %v1299 = vld [vmem:[#allocation13 + $0x40] sm:$0xff]
      %v1300 = vld [vmem:[#allocation13 + $0x48] sm:$0xff]
      %v1301 = vld [vmem:[#allocation13 + $0x50] sm:$0xff]
      %v1302 = vld [vmem:[#allocation13 + $0x58] sm:$0xff]
      %v1303 = vld [vmem:[#allocation13 + $0x60] sm:$0xff]
      %v1304 = vld [vmem:[#allocation13 + $0x68] sm:$0xff]
      %v1305 = vld [vmem:[#allocation13 + $0x70] sm:$0xff]
      %v1306 = vld [vmem:[#allocation13 + $0x78] sm:$0xff]
      %1307 = vmatprep.subr.mxu0 0.0
      %1308 = vmatpush1.msra.mxu0 %v1306
      %1309 = vmatprep.subr.mxu0 0.0
      %1310 = vmatpush1.msra.mxu0 %v1305
      %1311 = vmatprep.subr.mxu0 0.0
      %1312 = vmatpush1.msra.mxu0 %v1304
      %1313 = vmatprep.subr.mxu0 0.0
      %1314 = vmatpush1.msra.mxu0 %v1303
      %1315 = vmatprep.subr.mxu0 0.0
      %1316 = vmatpush1.msra.mxu0 %v1302
      %1317 = vmatprep.subr.mxu0 0.0
      %1318 = vmatpush1.msra.mxu0 %v1301
      %1319 = vmatprep.subr.mxu0 0.0
      %1320 = vmatpush1.msra.mxu0 %v1300
      %1321 = vmatprep.subr.mxu0 0.0
      %1322 = vmatpush1.msra.mxu0 %v1299
      %1323 = vmatprep.subr.mxu0 0.0
      %1324 = vmatpush1.msra.mxu0 %v1298
      %1325 = vmatprep.subr.mxu0 0.0
      %1326 = vmatpush1.msra.mxu0 %v1297
      %1327 = vmatprep.subr.mxu0 0.0
      %1328 = vmatpush1.msra.mxu0 %v1296
      %1329 = vmatprep.subr.mxu0 0.0
      %1330 = vmatpush1.msra.mxu0 %v1295
      %1331 = vmatprep.subr.mxu0 0.0
      %1332 = vmatpush1.msra.mxu0 %v1294
      %1333 = vmatprep.subr.mxu0 0.0
      %1334 = vmatpush1.msra.mxu0 %v1293
      %1335 = vmatprep.subr.mxu0 0.0
      %1336 = vmatpush1.msra.mxu0 %v1292
      %1337 = vmatprep.subr.mxu0 0.0
      %1338 = vmatpush1.msra.mxu0 %v1291
      %1339 = vmatprep.subr.mxu0 0.0
      %1340 = vmatpush2.msra.mxu0 0.0
      %1341 = vmatprep.subr.mxu0 0.0
      %1342 = vmatpush2.msra.mxu0 0.0
      %1343 = vmatprep.subr.mxu0 0.0
      %1344 = vmatpush2.msra.mxu0 0.0
      %1345 = vmatprep.subr.mxu0 0.0
      %1346 = vmatpush2.msra.mxu0 0.0
      %1347 = vmatprep.subr.mxu0 0.0
      %1348 = vmatpush2.msra.mxu0 0.0
      %1349 = vmatprep.subr.mxu0 0.0
      %1350 = vmatpush2.msra.mxu0 0.0
      %1351 = vmatprep.subr.mxu0 0.0
      %1352 = vmatpush2.msra.mxu0 0.0
      %1353 = vmatprep.subr.mxu0 0.0
      %1354 = vmatpush2.msra.mxu0 0.0
      %1355 = vmatprep.subr.mxu0 0.0
      %1356 = vmatpush2.msra.mxu0 0.0
      %1357 = vmatprep.subr.mxu0 0.0
      %1358 = vmatpush2.msra.mxu0 0.0
      %1359 = vmatprep.subr.mxu0 0.0
      %1360 = vmatpush2.msra.mxu0 0.0
      %1361 = vmatprep.subr.mxu0 0.0
      %1362 = vmatpush2.msra.mxu0 0.0
      %1363 = vmatprep.subr.mxu0 0.0
      %1364 = vmatpush2.msra.mxu0 0.0
      %1365 = vmatprep.subr.mxu0 0.0
      %1366 = vmatpush2.msra.mxu0 0.0
      %1367 = vmatprep.subr.mxu0 0.0
      %1368 = vmatpush2.msra.mxu0 0.0
      %1369 = vmatprep.subr.mxu0 0.0
      %1370 = vmatpush2.msra.mxu0 0.0
      %1371 = vmatprep.mubr.f32.mxu0 0.0
      %1372 = vmatmul.mubr.f32.gmra.mxu0 %v1290
      %v1373 = vpop.f32.mrf.mxu0
      %v1374 = vadd.f32 %v161, %v1373
      %v1375 = vpop.f32.mrf.mxu0
      %1376 = vdwg.mxu0
      %v1377 = vmax.f32 %v1374, 0.0
      %v1378 = vld [vmem:[#allocation15] sm:$0xff]
      %v1379 = vld [vmem:[#allocation15 + $0x8] sm:$0xff]
      %v1380 = vld [vmem:[#allocation15 + $0x10] sm:$0xff]
      %v1381 = vld [vmem:[#allocation15 + $0x18] sm:$0xff]
      %v1382 = vld [vmem:[#allocation15 + $0x20] sm:$0xff]
      %v1383 = vld [vmem:[#allocation15 + $0x28] sm:$0xff]
      %v1384 = vld [vmem:[#allocation15 + $0x30] sm:$0xff]
      %v1385 = vld [vmem:[#allocation15 + $0x38] sm:$0xff]
      %v1386 = vld [vmem:[#allocation15 + $0x40] sm:$0xff]
      %v1387 = vld [vmem:[#allocation15 + $0x48] sm:$0xff]
      %v1388 = vld [vmem:[#allocation15 + $0x50] sm:$0xff]
      %v1389 = vld [vmem:[#allocation15 + $0x58] sm:$0xff]
      %v1390 = vld [vmem:[#allocation15 + $0x60] sm:$0xff]
      %v1391 = vld [vmem:[#allocation15 + $0x68] sm:$0xff]
      %v1392 = vld [vmem:[#allocation15 + $0x70] sm:$0xff]
      %v1393 = vld [vmem:[#allocation15 + $0x78] sm:$0xff]
      %1394 = vmatprep.subr.mxu0 0.0
      %1395 = vmatpush1.msra.mxu0 %v1393
      %1396 = vmatprep.subr.mxu0 0.0
      %1397 = vmatpush1.msra.mxu0 %v1392
      %1398 = vmatprep.subr.mxu0 0.0
      %1399 = vmatpush1.msra.mxu0 %v1391
      %1400 = vmatprep.subr.mxu0 0.0
      %1401 = vmatpush1.msra.mxu0 %v1390
      %1402 = vmatprep.subr.mxu0 0.0
      %1403 = vmatpush1.msra.mxu0 %v1389
      %1404 = vmatprep.subr.mxu0 0.0
      %1405 = vmatpush1.msra.mxu0 %v1388
      %1406 = vmatprep.subr.mxu0 0.0
      %1407 = vmatpush1.msra.mxu0 %v1387
      %1408 = vmatprep.subr.mxu0 0.0
      %1409 = vmatpush1.msra.mxu0 %v1386
      %1410 = vmatprep.subr.mxu0 0.0
      %1411 = vmatpush1.msra.mxu0 %v1385
      %1412 = vmatprep.subr.mxu0 0.0
      %1413 = vmatpush1.msra.mxu0 %v1384
      %1414 = vmatprep.subr.mxu0 0.0
      %1415 = vmatpush1.msra.mxu0 %v1383
      %1416 = vmatprep.subr.mxu0 0.0
      %1417 = vmatpush1.msra.mxu0 %v1382
      %1418 = vmatprep.subr.mxu0 0.0
      %1419 = vmatpush1.msra.mxu0 %v1381
      %1420 = vmatprep.subr.mxu0 0.0
      %1421 = vmatpush1.msra.mxu0 %v1380
      %1422 = vmatprep.subr.mxu0 0.0
      %1423 = vmatpush1.msra.mxu0 %v1379
      %1424 = vmatprep.subr.mxu0 0.0
      %1425 = vmatpush1.msra.mxu0 %v1378
      %1426 = vmatprep.subr.mxu0 0.0
      %1427 = vmatpush2.msra.mxu0 0.0
      %1428 = vmatprep.subr.mxu0 0.0
      %1429 = vmatpush2.msra.mxu0 0.0
      %1430 = vmatprep.subr.mxu0 0.0
      %1431 = vmatpush2.msra.mxu0 0.0
      %1432 = vmatprep.subr.mxu0 0.0
      %1433 = vmatpush2.msra.mxu0 0.0
      %1434 = vmatprep.subr.mxu0 0.0
      %1435 = vmatpush2.msra.mxu0 0.0
      %1436 = vmatprep.subr.mxu0 0.0
      %1437 = vmatpush2.msra.mxu0 0.0
      %1438 = vmatprep.subr.mxu0 0.0
      %1439 = vmatpush2.msra.mxu0 0.0
      %1440 = vmatprep.subr.mxu0 0.0
      %1441 = vmatpush2.msra.mxu0 0.0
      %1442 = vmatprep.subr.mxu0 0.0
      %1443 = vmatpush2.msra.mxu0 0.0
      %1444 = vmatprep.subr.mxu0 0.0
      %1445 = vmatpush2.msra.mxu0 0.0
      %1446 = vmatprep.subr.mxu0 0.0
      %1447 = vmatpush2.msra.mxu0 0.0
      %1448 = vmatprep.subr.mxu0 0.0
      %1449 = vmatpush2.msra.mxu0 0.0
      %1450 = vmatprep.subr.mxu0 0.0
      %1451 = vmatpush2.msra.mxu0 0.0
      %1452 = vmatprep.subr.mxu0 0.0
      %1453 = vmatpush2.msra.mxu0 0.0
      %1454 = vmatprep.subr.mxu0 0.0
      %1455 = vmatpush2.msra.mxu0 0.0
      %1456 = vmatprep.subr.mxu0 0.0
      %1457 = vmatpush2.msra.mxu0 0.0
      %1458 = vmatprep.mubr.f32.mxu0 0.0
      %1459 = vmatmul.mubr.f32.gmra.mxu0 %v1377
      %v1460 = vpop.f32.mrf.mxu0
      %v1461 = vadd.f32 %v168, %v1460
      %v1462 = vpop.f32.mrf.mxu0
      %1463 = vdwg.mxu0
      %v1464 = vadd.f32 %v1461, %v234
      %s1465 = scalar_lea.vmem [#allocation16], %s228
      %1466 = vst [vmem:[%s1465] sm:$0xff] %v1464
    $region82: #{tpu_custom_call.1} parent=1 // loop_footer
      %s220 = sadd.s32 1, %s216
    $region83: #{tpu_custom_call.1} parent=1 // loop_footer_branch
      %215 = sbr.rel target = $region79
    $region84: #{tpu_custom_call.1} parent=1 // loop_exit
      _
    // Predicated region
    $region85: #{tpu_custom_call.1} parent=1 // pred_check
      _
    $region86: #{tpu_custom_call.1} parent=1 // pred_check_branch
      %1468 = sbr.rel (0) target = $region88
    $region87: #{tpu_custom_call.1} parent=1 // pred_region
      %s1470 = ssub.s32 896, 896
      %1471 = vsyncadd [#allocation6], %s1470
      %s1472 = sshll.u32 [#allocation16], 4
      %s1473 = int_to_ptr.vmem [resolvable:$true] %s1472
      %1478 = dma.vmem_to_hbm [thread:$0]  %s1473, 896, %s13, [#allocation6], 128, 128, 8
    $region88: #{tpu_custom_call.1} parent=1 // pred_fallthru
      _
    // Predicated region
    $region89: #{tpu_custom_call.1} parent=1 // pred_check
      _
    $region90: #{tpu_custom_call.1} parent=1 // pred_check_branch
      %1480 = sbr.rel (0) target = $region92
    $region91: #{tpu_custom_call.1} parent=1 // pred_region
      %1481 = dma.done [#allocation6], 896
    $region92: #{tpu_custom_call.1} parent=1 // pred_fallthru
      _
    %1482 = vsyncpa [#allocation5], 1
    %1483 = vsyncpa [#allocation8], 1
    %1484 = vsyncpa [#allocation11], 1
    %1485 = vsyncpa [#allocation14], 1
    %1486 = vsyncpa [#allocation6], 1

</llo_original>
